<compile_context>
chip_gen: v5e
topology: v5e:2x2
jax: 0.10.0
libtpu: 0.0.40
codegen_flags: <defaults>
</compile_context>

<pallas_src>
import functools

import jax
import jax.numpy as jnp
from jax import lax
from jax.experimental import pallas as pl
from jax.experimental.pallas import tpu as pltpu


# --------------------------- fused Pallas kernel -----------------------------

def _fused_upsamp_kernel(ae_ref, ao_ref, b_ref,
                         wup_ref, upb_ref,
                         k1_ref, s1_ref, t1_ref,
                         k2_ref, s2_ref, t2_ref,
                         o_ref,
                         *, bblk, Cup, Wa, Hb, Hh, H1, H2, py0):
    f32, bf16 = jnp.float32, jnp.bfloat16
    PL = Wa * Cup                    # upsampled-"b" lanes of the concat row
    n1, n2 = H1 // 2, H2 // 2

    upb = upb_ref[...]               # (1, PL) f32
    s1, t1 = s1_ref[...], t1_ref[...]
    s2, t2 = s2_ref[...], t2_ref[...]

    for ib in range(bblk):
        a_par = (ae_ref[ib], ao_ref[ib])          # (Hh, Wa*Ca) bf16, even/odd rows
        b_rows = b_ref[ib]                        # (Hb, Wb*Cb) bf16

        # ---- stage 1: ConvTranspose2d(k=2,s=2) + corp_cat, fused.  The W
        # interleave / W padding live in wup's columns; the H interleave / H
        # padding live in the parity split + row offsets.  Each parity plane
        # becomes one [a | padded b_up] row matrix (bf16 value): zeros are
        # created only for the true H-padding rows.
        cat = [None, None]
        for dh in range(2):
            par = (py0 + dh) % 2
            r0 = (py0 + dh) // 2
            y = jnp.dot(b_rows, wup_ref[dh], preferred_element_type=f32) + upb
            pieces = [y.astype(bf16)]                          # (Hb, PL)
            if r0 > 0:
                pieces.insert(0, jnp.zeros((r0, PL), bf16))
            if r0 + Hb < Hh:
                pieces.append(jnp.zeros((Hh - r0 - Hb, PL), bf16))
            bplane = pieces[0] if len(pieces) == 1 else jnp.concatenate(pieces, 0)
            cat[par] = jnp.concatenate([a_par[par], bplane], axis=1)  # (Hh, Wa*Cab)

        # ---- stage 2: conv1 (3x3 valid) + BN + ReLU.  kw taps and the concat
        # split are folded into k1's banded / stacked structure -> one matmul
        # per (output-row parity, kh), K = Wa*(Ca+Cup).
        x1 = []
        for alpha in range(2):
            acc = None
            for kh in range(3):
                par = (alpha + kh) % 2
                r0 = (alpha + kh) // 2
                d = jnp.dot(cat[par][r0:r0 + n1, :], k1_ref[kh],
                            preferred_element_type=f32)
                acc = d if acc is None else acc + d
            x1.append(jnp.maximum(acc * s1 + t1, 0.0).astype(bf16))

        # ---- stage 3: conv2 (3x3 valid) + BN + ReLU, stored straight into
        # the lane-padded (multiple-of-128) output block: full-width stores.
        for beta in range(2):
            acc = None
            for kh in range(3):
                par = (beta + kh) % 2
                r0 = (beta + kh) // 2
                d = jnp.dot(x1[par][r0:r0 + n2, :], k2_ref[kh],
                            preferred_element_type=f32)
                acc = d if acc is None else acc + d
            o_ref[ib, beta] = jnp.maximum(acc * s2 + t2, 0.0)


# ------------------------------ JAX wrapper -----------------------------------

def _banded_conv_weight(w, w_out):
    # w: (3, 3, Cin, Cout) -> (3, (w_out+2)*Cin, w_out*Cout).
    # Plane kh holds all three kw taps as one banded block matrix:
    #   row (wo+kw)*Cin + ci, col wo*Cout + co  <-  w[kh, kw, ci, co]
    _, _, cin, cout = w.shape
    eye = jnp.eye(w_out, dtype=w.dtype)
    planes = []
    for kh in range(3):
        m = jnp.zeros(((w_out + 2) * cin, w_out * cout), w.dtype)
        for kw in range(3):
            m = m.at[kw * cin:(kw + w_out) * cin, :].add(jnp.kron(eye, w[kh, kw]))
        planes.append(m)
    return jnp.stack(planes, axis=0)


def upsamp_forward(a_nchw, b_nchw, p, eps=1e-5):
    f32, bf16 = jnp.float32, jnp.bfloat16

    N, Ca, Ha, Wa = a_nchw.shape
    Nb, Cb, Hb, Wb = b_nchw.shape
    assert N == Nb
    Cup = p["up_w"].shape[1]
    Hu, Wu = 2 * Hb, 2 * Wb
    C1 = p["c1_w"].shape[0]
    C2 = p["c2_w"].shape[0]
    Cab = Ca + Cup
    assert p["c1_w"].shape[1] == Cab

    # Reproduce torch corp_cat exactly (incl. its quirky dx/dy usage:
    # dx = a.H - b_up.H pads W, dy = a.W - b_up.W pads H).
    dx = Ha - Hu
    dy = Wa - Wu
    px0 = dx // 2
    py0 = dy // 2
    assert dx >= 0 and dy >= 0, "only the pad path of corp_cat is supported"
    assert Hu + dy == Ha and Wu + dx == Wa, "corp_cat shapes inconsistent"
    assert Ha % 2 == 0, "row-parity layout needs an even skip height"

    H1, W1 = Ha - 2, Wa - 2          # conv1 output (valid 3x3)
    H2, W2 = H1 - 2, W1 - 2          # conv2 output
    Hh = Ha // 2
    OP = max(128, -(-(W2 * C2) // 128) * 128)   # lane-padded output row width

    # Batch blocking: amortize per-grid-step overhead, but keep >=2 parallel
    # grid slices whenever possible (v7x has 2 TensorCores per chip).
    bblk = 1
    for cand in (4, 2):
        if N % cand == 0 and N // cand >= 2:
            bblk = cand
            break

    # ------------------ parameter prep (tiny, trace-time) --------------------
    # ConvTranspose weight (Cin, Cout, 2, 2): the 2x W interleave + corp_cat W
    # padding folded into one (Wb*Cb, Wa*Cup) matrix per output-row offset dh.
    wt = p["up_w"].astype(f32)
    wup = []
    for dh in range(2):
        m = jnp.transpose(wt[:, :, dh, :], (0, 2, 1)).reshape(Cb, 2 * Cup)
        k = jnp.kron(jnp.eye(Wb, dtype=f32), m)                  # (Wb*Cb, Wu*Cup)
        k = jnp.pad(k, ((0, 0), (px0 * Cup, (Wa - px0 - Wu) * Cup)))
        wup.append(k)
    wup = jnp.stack(wup, axis=0).astype(bf16)                    # (2, Wb*Cb, Wa*Cup)
    upb = jnp.zeros((Wa * Cup,), f32).at[
        px0 * Cup:(px0 + Wu) * Cup].set(jnp.tile(p["up_b"].astype(f32), Wu))
    upb = upb.reshape(1, -1)

    # Conv weights OIHW -> (kh, kw, cin, cout) -> banded per-kh matrices with
    # the kw taps merged; conv1 additionally stacks the [a | b_up] halves so
    # corp_cat is fused along K.  conv2 columns are lane-padded to OP.
    w1 = jnp.transpose(p["c1_w"].astype(f32), (2, 3, 1, 0))
    k1 = jnp.concatenate([_banded_conv_weight(w1[:, :, :Ca, :], W1),
                          _banded_conv_weight(w1[:, :, Ca:, :], W1)],
                         axis=1).astype(bf16)                    # (3, Wa*Cab, W1*C1)
    w2 = jnp.transpose(p["c2_w"].astype(f32), (2, 3, 1, 0))
    k2 = _banded_conv_weight(w2, W2)                             # (3, W1*C1, W2*C2)
    k2 = jnp.pad(k2, ((0, 0), (0, 0), (0, OP - W2 * C2))).astype(bf16)

    # Inference-mode BatchNorm (+ conv bias) folded into per-channel scale /
    # bias rows, tiled across W; conv2's rows are lane-padded with zeros.
    s1c = p["bn1_g"] / jnp.sqrt(p["bn1_v"] + eps)
    t1c = (p["c1_b"] - p["bn1_m"]) * s1c + p["bn1_b"]
    s2c = p["bn2_g"] / jnp.sqrt(p["bn2_v"] + eps)
    t2c = (p["c2_b"] - p["bn2_m"]) * s2c + p["bn2_b"]
    s1 = jnp.tile(s1c.astype(f32), W1).reshape(1, -1)
    t1 = jnp.tile(t1c.astype(f32), W1).reshape(1, -1)
    s2 = jnp.pad(jnp.tile(s2c.astype(f32), W2), (0, OP - W2 * C2)).reshape(1, -1)
    t2 = jnp.pad(jnp.tile(t2c.astype(f32), W2), (0, OP - W2 * C2)).reshape(1, -1)

    # -------- input prep: NCHW -> bf16 (H, W*C) row matrices, parity-split ---
    a2d = jnp.transpose(a_nchw, (0, 2, 3, 1)).astype(bf16).reshape(N, Ha, Wa * Ca)
    ae, ao = a2d[:, 0::2, :], a2d[:, 1::2, :]                    # (N, Hh, Wa*Ca)
    b2d = jnp.transpose(b_nchw, (0, 2, 3, 1)).astype(bf16).reshape(N, Hb, Wb * Cb)

    kernel = functools.partial(
        _fused_upsamp_kernel,
        bblk=bblk, Cup=Cup, Wa=Wa, Hb=Hb, Hh=Hh, H1=H1, H2=H2, py0=py0)

    operands = (ae, ao, b2d, wup, upb, k1, s1, t1, k2, s2, t2)

    # True (un-padded) algorithmic FLOPs for the scheduler hint.
    flops = 2 * N * (Hb * Wb * Cb * Cup * 4
                     + H1 * W1 * C1 * Cab * 9
                     + H2 * W2 * C2 * C1 * 9)
    out_bytes = N * 2 * (H2 // 2) * OP * 4
    bytes_accessed = sum(int(x.size) * x.dtype.itemsize for x in operands) + out_bytes

    # VMEM budget derived from the actual (double-buffered) block sizes and
    # clamped so it fits every generation's scratchpad (v7x: 64 MiB total).
    blk_bytes = ((2 * bblk * Hh * Wa * Ca + bblk * Hb * Wb * Cb) * 2
                 + sum(int(x.size) * x.dtype.itemsize for x in
                       (wup, upb, k1, s1, t1, k2, s2, t2))
                 + bblk * 2 * (H2 // 2) * OP * 4)
    vmem_limit = int(min(max(2 * blk_bytes + (8 << 20), 16 << 20), 64 << 20))

    out = pl.pallas_call(
        kernel,
        out_shape=jax.ShapeDtypeStruct((N, 2, H2 // 2, OP), f32),
        grid_spec=pltpu.PrefetchScalarGridSpec(
            num_scalar_prefetch=0,
            grid=(N // bblk,),
            in_specs=[
                pl.BlockSpec((bblk, Hh, Wa * Ca), lambda n: (n, 0, 0)),   # a even rows
                pl.BlockSpec((bblk, Hh, Wa * Ca), lambda n: (n, 0, 0)),   # a odd rows
                pl.BlockSpec((bblk, Hb, Wb * Cb), lambda n: (n, 0, 0)),   # b rows
                pl.BlockSpec((2, Wb * Cb, Wa * Cup), lambda n: (0, 0, 0)),  # up weights
                pl.BlockSpec((1, Wa * Cup), lambda n: (0, 0)),              # up bias row
                pl.BlockSpec((3, Wa * Cab, W1 * C1), lambda n: (0, 0, 0)),  # conv1 w
                pl.BlockSpec((1, W1 * C1), lambda n: (0, 0)),               # bn1 scale
                pl.BlockSpec((1, W1 * C1), lambda n: (0, 0)),               # bn1 bias
                pl.BlockSpec((3, W1 * C1, OP), lambda n: (0, 0, 0)),        # conv2 w
                pl.BlockSpec((1, OP), lambda n: (0, 0)),                    # bn2 scale
                pl.BlockSpec((1, OP), lambda n: (0, 0)),                    # bn2 bias
            ],
            out_specs=pl.BlockSpec((bblk, 2, H2 // 2, OP),
                                   lambda n: (n, 0, 0, 0)),
        ),
        compiler_params=pltpu.CompilerParams(
            dimension_semantics=("parallel",),
            vmem_limit_bytes=vmem_limit),
        cost_estimate=pl.CostEstimate(
            flops=flops, transcendentals=0, bytes_accessed=bytes_accessed),
    )(*operands)

    # (N, 2, H2/2, OP) -> crop lane padding, interleave parity planes -> NCHW.
    out = out[..., :W2 * C2].reshape(N, 2, H2 // 2, W2, C2)
    out = jnp.transpose(out, (0, 4, 2, 1, 3)).reshape(N, C2, H2, W2)
    return out


# --------------------------- pure-JAX reference -------------------------------

def corp_cat(a_nhwc, b_nhwc):
    dx = a_nhwc.shape[1] - b_nhwc.shape[1]
    dy = a_nhwc.shape[2] - b_nhwc.shape[2]
    pad_b = jnp.pad(
        b_nhwc,
        ((0, 0), (dy // 2, dy - dy // 2), (dx // 2, dx - dx // 2), (0, 0)),
    )
    return jnp.concatenate([a_nhwc, pad_b], axis=-1)


def reference_forward(a_nchw, b_nchw, p, eps=1e-5):
    a = jnp.transpose(a_nchw, (0, 2, 3, 1)).astype(jnp.float32)
    b = jnp.transpose(b_nchw, (0, 2, 3, 1)).astype(jnp.float32)
    wt = p["up_w"]
    N, Hb, Wb, _ = b.shape
    Cup = wt.shape[1]
    y = jnp.einsum("nhwc,cokl->nhwklo", b, wt) + p["up_b"]
    y = y.transpose(0, 1, 3, 2, 4, 5).reshape(N, 2 * Hb, 2 * Wb, Cup)
    ab = corp_cat(a, y)

    def cbr(x, w, bc, g, bb, m, v):
        w_hwio = jnp.transpose(w, (2, 3, 1, 0))
        z = lax.conv_general_dilated(
            x, w_hwio, (1, 1), "VALID",
            dimension_numbers=("NHWC", "HWIO", "NHWC")) + bc
        z = (z - m) / jnp.sqrt(v + eps) * g + bb
        return jnp.maximum(z, 0.0)

    x = cbr(ab, p["c1_w"], p["c1_b"], p["bn1_g"], p["bn1_b"], p["bn1_m"], p["bn1_v"])
    x = cbr(x, p["c2_w"], p["c2_b"], p["bn2_g"], p["bn2_b"], p["bn2_m"], p["bn2_v"])
    return jnp.transpose(x, (0, 3, 1, 2))


# --------------------------------- main ---------------------------------------

if __name__ == "__main__":
    inch, outch, N = 8, 4, 2
    key = jax.random.PRNGKey(0)
    ks = jax.random.split(key, 8)

    # Pre-round the matmul operands to bf16-representable values so the
    # kernel's bf16 MXU path stays close to the f32 reference.
    def bf16_round(x):
        return x.astype(jnp.bfloat16).astype(jnp.float32)

    # PyTorch NCHW convention: a is the skip tensor (inch//2 channels, larger
    # spatial), b is the tensor to be upsampled (inch channels).
    a = bf16_round(jax.random.normal(ks[0], (N, inch // 2, 18, 18), jnp.float32))
    b = bf16_round(jax.random.normal(ks[1], (N, inch, 8, 8), jnp.float32))

    ar = lambda c: jnp.arange(c, dtype=jnp.float32)
    params = dict(
        up_w=bf16_round(0.2 * jax.random.normal(ks[2], (inch, inch // 2, 2, 2),
                                                jnp.float32)),
        up_b=0.1 * ar(inch // 2),
        c1_w=bf16_round(0.1 * jax.random.normal(ks[3], (outch, inch, 3, 3),
                                                jnp.float32)),
        c1_b=0.05 * ar(outch),
        bn1_g=1.0 + 0.05 * ar(outch),
        bn1_b=0.02 * ar(outch),
        bn1_m=0.01 * ar(outch),
        bn1_v=1.0 + 0.1 * ar(outch),
        c2_w=bf16_round(0.1 * jax.random.normal(ks[4], (outch, outch, 3, 3),
                                                jnp.float32)),
        c2_b=0.05 * ar(outch),
        bn2_g=1.0 + 0.05 * ar(outch),
        bn2_b=0.02 * ar(outch),
        bn2_m=0.01 * ar(outch),
        bn2_v=1.0 + 0.1 * ar(outch),
    )

    out = jax.block_until_ready(jax.jit(upsamp_forward)(a, b, params))
    ref = jax.block_until_ready(reference_forward(a, b, params))

    assert out.shape == (N, outch, 14, 14), out.shape
    assert bool(jnp.all(jnp.isfinite(out)))
    err = float(jnp.max(jnp.abs(out - ref)))
    assert bool(jnp.allclose(out, ref, rtol=2e-2, atol=2e-2)), err
    print("KERNEL_OK")
</pallas_src>

<mosaic_0001>
module attributes {stable_mosaic.version = 11 : i64} {
  func.func @_fused_upsamp_kernel(%arg0: i32, %arg1: memref<1x9x72xbf16, #tpu.memory_space<vmem>>, %arg2: memref<1x9x72xbf16, #tpu.memory_space<vmem>>, %arg3: memref<1x8x64xbf16, #tpu.memory_space<vmem>>, %arg4: memref<2x64x72xbf16, #tpu.memory_space<vmem>>, %arg5: memref<1x72xf32, #tpu.memory_space<vmem>>, %arg6: memref<3x144x64xbf16, #tpu.memory_space<vmem>>, %arg7: memref<1x64xf32, #tpu.memory_space<vmem>>, %arg8: memref<1x64xf32, #tpu.memory_space<vmem>>, %arg9: memref<3x64x128xbf16, #tpu.memory_space<vmem>>, %arg10: memref<1x128xf32, #tpu.memory_space<vmem>>, %arg11: memref<1x128xf32, #tpu.memory_space<vmem>>, %arg12: memref<1x2x7x128xf32, #tpu.memory_space<vmem>>) attributes {dimension_semantics = [#tpu.dimension_semantics<parallel>], iteration_bounds = array<i64: 2>, scalar_prefetch = 0 : i64, scratch_operands = 0 : i64, tpu.core_type = #tpu.core_type<tc>, window_params = [{transform_indices = @transform_0, window_bounds = array<i64: 1, 9, 72>}, {transform_indices = @transform_1, window_bounds = array<i64: 1, 9, 72>}, {transform_indices = @transform_2, window_bounds = array<i64: 1, 8, 64>}, {pipeline_mode = #tpu.pipeline_mode<synchronous>, transform_indices = @transform_3, window_bounds = array<i64: 2, 64, 72>}, {pipeline_mode = #tpu.pipeline_mode<synchronous>, transform_indices = @transform_4, window_bounds = array<i64: 1, 72>}, {pipeline_mode = #tpu.pipeline_mode<synchronous>, transform_indices = @transform_5, window_bounds = array<i64: 3, 144, 64>}, {pipeline_mode = #tpu.pipeline_mode<synchronous>, transform_indices = @transform_6, window_bounds = array<i64: 1, 64>}, {pipeline_mode = #tpu.pipeline_mode<synchronous>, transform_indices = @transform_7, window_bounds = array<i64: 1, 64>}, {pipeline_mode = #tpu.pipeline_mode<synchronous>, transform_indices = @transform_8, window_bounds = array<i64: 3, 64, 128>}, {pipeline_mode = #tpu.pipeline_mode<synchronous>, transform_indices = @transform_9, window_bounds = array<i64: 1, 128>}, {pipeline_mode = #tpu.pipeline_mode<synchronous>, transform_indices = @transform_10, window_bounds = array<i64: 1, 128>}, {transform_indices = @transform_11, window_bounds = array<i64: 1, 2, 7, 128>}]} {
    %c0 = arith.constant 0 : index
    %c0_0 = arith.constant 0 : index
    %0 = vector.load %arg5[%c0, %c0_0] : memref<1x72xf32, #tpu.memory_space<vmem>>, vector<1x72xf32>
    %c0_1 = arith.constant 0 : index
    %c0_2 = arith.constant 0 : index
    %1 = vector.load %arg7[%c0_1, %c0_2] : memref<1x64xf32, #tpu.memory_space<vmem>>, vector<1x64xf32>
    %c0_3 = arith.constant 0 : index
    %c0_4 = arith.constant 0 : index
    %2 = vector.load %arg8[%c0_3, %c0_4] : memref<1x64xf32, #tpu.memory_space<vmem>>, vector<1x64xf32>
    %c0_5 = arith.constant 0 : index
    %c0_6 = arith.constant 0 : index
    %3 = vector.load %arg10[%c0_5, %c0_6] : memref<1x128xf32, #tpu.memory_space<vmem>>, vector<1x128xf32>
    %c0_7 = arith.constant 0 : index
    %c0_8 = arith.constant 0 : index
    %4 = vector.load %arg11[%c0_7, %c0_8] : memref<1x128xf32, #tpu.memory_space<vmem>>, vector<1x128xf32>
    %c0_9 = arith.constant 0 : index
    %c0_10 = arith.constant 0 : index
    %c0_11 = arith.constant 0 : index
    %5 = vector.load %arg1[%c0_9, %c0_10, %c0_11] : memref<1x9x72xbf16, #tpu.memory_space<vmem>>, vector<1x9x72xbf16>
    %6 = vector.shape_cast %5 : vector<1x9x72xbf16> to vector<9x72xbf16>
    %c0_12 = arith.constant 0 : index
    %c0_13 = arith.constant 0 : index
    %c0_14 = arith.constant 0 : index
    %7 = vector.load %arg2[%c0_12, %c0_13, %c0_14] : memref<1x9x72xbf16, #tpu.memory_space<vmem>>, vector<1x9x72xbf16>
    %8 = vector.shape_cast %7 : vector<1x9x72xbf16> to vector<9x72xbf16>
    %c0_15 = arith.constant 0 : index
    %c0_16 = arith.constant 0 : index
    %c0_17 = arith.constant 0 : index
    %9 = vector.load %arg3[%c0_15, %c0_16, %c0_17] : memref<1x8x64xbf16, #tpu.memory_space<vmem>>, vector<1x8x64xbf16>
    %10 = vector.shape_cast %9 : vector<1x8x64xbf16> to vector<8x64xbf16>
    %c0_18 = arith.constant 0 : index
    %c0_19 = arith.constant 0 : index
    %c0_20 = arith.constant 0 : index
    %11 = vector.load %arg4[%c0_18, %c0_19, %c0_20] : memref<2x64x72xbf16, #tpu.memory_space<vmem>>, vector<1x64x72xbf16>
    %12 = vector.shape_cast %11 : vector<1x64x72xbf16> to vector<64x72xbf16>
    %cst = arith.constant dense<0.000000e+00> : vector<8x72xf32>
    %13 = tpu.matmul %10, %12, %cst {dimension_numbers = #tpu.dot_dimension_numbers<[1], [0], [0], [1], [0, 0, 1, 1], [], []>} : vector<8x64xbf16>, vector<64x72xbf16>, vector<8x72xf32> -> vector<8x72xf32>
    %14 = vector.broadcast %0 : vector<1x72xf32> to vector<8x72xf32>
    %15 = arith.addf %13, %14 : vector<8x72xf32>
    %16 = arith.truncf %15 : vector<8x72xf32> to vector<8x72xbf16>
    %cst_21 = arith.constant 0.000000e+00 : bf16
    %17 = vector.broadcast %cst_21 : bf16 to vector<1x72xbf16>
    %18 = tpu.concatenate %16, %17 in 0 : vector<8x72xbf16>, vector<1x72xbf16> -> vector<9x72xbf16>
    %19 = tpu.concatenate %8, %18 in 1 : vector<9x72xbf16>, vector<9x72xbf16> -> vector<9x144xbf16>
    %c1 = arith.constant 1 : index
    %c0_22 = arith.constant 0 : index
    %c0_23 = arith.constant 0 : index
    %20 = vector.load %arg4[%c1, %c0_22, %c0_23] : memref<2x64x72xbf16, #tpu.memory_space<vmem>>, vector<1x64x72xbf16>
    %21 = vector.shape_cast %20 : vector<1x64x72xbf16> to vector<64x72xbf16>
    %cst_24 = arith.constant dense<0.000000e+00> : vector<8x72xf32>
    %22 = tpu.matmul %10, %21, %cst_24 {dimension_numbers = #tpu.dot_dimension_numbers<[1], [0], [0], [1], [0, 0, 1, 1], [], []>} : vector<8x64xbf16>, vector<64x72xbf16>, vector<8x72xf32> -> vector<8x72xf32>
    %23 = vector.broadcast %0 : vector<1x72xf32> to vector<8x72xf32>
    %24 = arith.addf %22, %23 : vector<8x72xf32>
    %25 = arith.truncf %24 : vector<8x72xf32> to vector<8x72xbf16>
    %cst_25 = arith.constant 0.000000e+00 : bf16
    %26 = vector.broadcast %cst_25 : bf16 to vector<1x72xbf16>
    %27 = tpu.concatenate %26, %25 in 0 : vector<1x72xbf16>, vector<8x72xbf16> -> vector<9x72xbf16>
    %28 = tpu.concatenate %6, %27 in 1 : vector<9x72xbf16>, vector<9x72xbf16> -> vector<9x144xbf16>
    %29 = vector.extract_strided_slice %28 {offsets = [0, 0], sizes = [8, 144], strides = [1, 1]} : vector<9x144xbf16> to vector<8x144xbf16>
    %c0_26 = arith.constant 0 : index
    %c0_27 = arith.constant 0 : index
    %c0_28 = arith.constant 0 : index
    %30 = vector.load %arg6[%c0_26, %c0_27, %c0_28] : memref<3x144x64xbf16, #tpu.memory_space<vmem>>, vector<1x144x64xbf16>
    %31 = vector.shape_cast %30 : vector<1x144x64xbf16> to vector<144x64xbf16>
    %cst_29 = arith.constant dense<0.000000e+00> : vector<8x64xf32>
    %32 = tpu.matmul %29, %31, %cst_29 {dimension_numbers = #tpu.dot_dimension_numbers<[1], [0], [0], [1], [0, 0, 1, 1], [], []>} : vector<8x144xbf16>, vector<144x64xbf16>, vector<8x64xf32> -> vector<8x64xf32>
    %33 = vector.extract_strided_slice %19 {offsets = [0, 0], sizes = [8, 144], strides = [1, 1]} : vector<9x144xbf16> to vector<8x144xbf16>
    %c1_30 = arith.constant 1 : index
    %c0_31 = arith.constant 0 : index
    %c0_32 = arith.constant 0 : index
    %34 = vector.load %arg6[%c1_30, %c0_31, %c0_32] : memref<3x144x64xbf16, #tpu.memory_space<vmem>>, vector<1x144x64xbf16>
    %35 = vector.shape_cast %34 : vector<1x144x64xbf16> to vector<144x64xbf16>
    %cst_33 = arith.constant dense<0.000000e+00> : vector<8x64xf32>
    %36 = tpu.matmul %33, %35, %cst_33 {dimension_numbers = #tpu.dot_dimension_numbers<[1], [0], [0], [1], [0, 0, 1, 1], [], []>} : vector<8x144xbf16>, vector<144x64xbf16>, vector<8x64xf32> -> vector<8x64xf32>
    %37 = arith.addf %32, %36 : vector<8x64xf32>
    %38 = vector.extract_strided_slice %28 {offsets = [1, 0], sizes = [8, 144], strides = [1, 1]} : vector<9x144xbf16> to vector<8x144xbf16>
    %c2 = arith.constant 2 : index
    %c0_34 = arith.constant 0 : index
    %c0_35 = arith.constant 0 : index
    %39 = vector.load %arg6[%c2, %c0_34, %c0_35] : memref<3x144x64xbf16, #tpu.memory_space<vmem>>, vector<1x144x64xbf16>
    %40 = vector.shape_cast %39 : vector<1x144x64xbf16> to vector<144x64xbf16>
    %cst_36 = arith.constant dense<0.000000e+00> : vector<8x64xf32>
    %41 = tpu.matmul %38, %40, %cst_36 {dimension_numbers = #tpu.dot_dimension_numbers<[1], [0], [0], [1], [0, 0, 1, 1], [], []>} : vector<8x144xbf16>, vector<144x64xbf16>, vector<8x64xf32> -> vector<8x64xf32>
    %42 = arith.addf %37, %41 : vector<8x64xf32>
    %43 = vector.broadcast %1 : vector<1x64xf32> to vector<8x64xf32>
    %44 = arith.mulf %42, %43 : vector<8x64xf32>
    %45 = vector.broadcast %2 : vector<1x64xf32> to vector<8x64xf32>
    %46 = arith.addf %44, %45 : vector<8x64xf32>
    %cst_37 = arith.constant 0.000000e+00 : f32
    %47 = vector.broadcast %cst_37 : f32 to vector<8x64xf32>
    %48 = arith.maximumf %46, %47 : vector<8x64xf32>
    %49 = arith.truncf %48 : vector<8x64xf32> to vector<8x64xbf16>
    %50 = vector.extract_strided_slice %19 {offsets = [0, 0], sizes = [8, 144], strides = [1, 1]} : vector<9x144xbf16> to vector<8x144xbf16>
    %c0_38 = arith.constant 0 : index
    %c0_39 = arith.constant 0 : index
    %c0_40 = arith.constant 0 : index
    %51 = vector.load %arg6[%c0_38, %c0_39, %c0_40] : memref<3x144x64xbf16, #tpu.memory_space<vmem>>, vector<1x144x64xbf16>
    %52 = vector.shape_cast %51 : vector<1x144x64xbf16> to vector<144x64xbf16>
    %cst_41 = arith.constant dense<0.000000e+00> : vector<8x64xf32>
    %53 = tpu.matmul %50, %52, %cst_41 {dimension_numbers = #tpu.dot_dimension_numbers<[1], [0], [0], [1], [0, 0, 1, 1], [], []>} : vector<8x144xbf16>, vector<144x64xbf16>, vector<8x64xf32> -> vector<8x64xf32>
    %54 = vector.extract_strided_slice %28 {offsets = [1, 0], sizes = [8, 144], strides = [1, 1]} : vector<9x144xbf16> to vector<8x144xbf16>
    %c1_42 = arith.constant 1 : index
    %c0_43 = arith.constant 0 : index
    %c0_44 = arith.constant 0 : index
    %55 = vector.load %arg6[%c1_42, %c0_43, %c0_44] : memref<3x144x64xbf16, #tpu.memory_space<vmem>>, vector<1x144x64xbf16>
    %56 = vector.shape_cast %55 : vector<1x144x64xbf16> to vector<144x64xbf16>
    %cst_45 = arith.constant dense<0.000000e+00> : vector<8x64xf32>
    %57 = tpu.matmul %54, %56, %cst_45 {dimension_numbers = #tpu.dot_dimension_numbers<[1], [0], [0], [1], [0, 0, 1, 1], [], []>} : vector<8x144xbf16>, vector<144x64xbf16>, vector<8x64xf32> -> vector<8x64xf32>
    %58 = arith.addf %53, %57 : vector<8x64xf32>
    %59 = vector.extract_strided_slice %19 {offsets = [1, 0], sizes = [8, 144], strides = [1, 1]} : vector<9x144xbf16> to vector<8x144xbf16>
    %c2_46 = arith.constant 2 : index
    %c0_47 = arith.constant 0 : index
    %c0_48 = arith.constant 0 : index
    %60 = vector.load %arg6[%c2_46, %c0_47, %c0_48] : memref<3x144x64xbf16, #tpu.memory_space<vmem>>, vector<1x144x64xbf16>
    %61 = vector.shape_cast %60 : vector<1x144x64xbf16> to vector<144x64xbf16>
    %cst_49 = arith.constant dense<0.000000e+00> : vector<8x64xf32>
    %62 = tpu.matmul %59, %61, %cst_49 {dimension_numbers = #tpu.dot_dimension_numbers<[1], [0], [0], [1], [0, 0, 1, 1], [], []>} : vector<8x144xbf16>, vector<144x64xbf16>, vector<8x64xf32> -> vector<8x64xf32>
    %63 = arith.addf %58, %62 : vector<8x64xf32>
    %64 = vector.broadcast %1 : vector<1x64xf32> to vector<8x64xf32>
    %65 = arith.mulf %63, %64 : vector<8x64xf32>
    %66 = vector.broadcast %2 : vector<1x64xf32> to vector<8x64xf32>
    %67 = arith.addf %65, %66 : vector<8x64xf32>
    %cst_50 = arith.constant 0.000000e+00 : f32
    %68 = vector.broadcast %cst_50 : f32 to vector<8x64xf32>
    %69 = arith.maximumf %67, %68 : vector<8x64xf32>
    %70 = arith.truncf %69 : vector<8x64xf32> to vector<8x64xbf16>
    %71 = vector.extract_strided_slice %49 {offsets = [0, 0], sizes = [7, 64], strides = [1, 1]} : vector<8x64xbf16> to vector<7x64xbf16>
    %c0_51 = arith.constant 0 : index
    %c0_52 = arith.constant 0 : index
    %c0_53 = arith.constant 0 : index
    %72 = vector.load %arg9[%c0_51, %c0_52, %c0_53] : memref<3x64x128xbf16, #tpu.memory_space<vmem>>, vector<1x64x128xbf16>
    %73 = vector.shape_cast %72 : vector<1x64x128xbf16> to vector<64x128xbf16>
    %cst_54 = arith.constant dense<0.000000e+00> : vector<7x128xf32>
    %74 = tpu.matmul %71, %73, %cst_54 {dimension_numbers = #tpu.dot_dimension_numbers<[1], [0], [0], [1], [0, 0, 1, 1], [], []>} : vector<7x64xbf16>, vector<64x128xbf16>, vector<7x128xf32> -> vector<7x128xf32>
    %75 = vector.extract_strided_slice %70 {offsets = [0, 0], sizes = [7, 64], strides = [1, 1]} : vector<8x64xbf16> to vector<7x64xbf16>
    %c1_55 = arith.constant 1 : index
    %c0_56 = arith.constant 0 : index
    %c0_57 = arith.constant 0 : index
    %76 = vector.load %arg9[%c1_55, %c0_56, %c0_57] : memref<3x64x128xbf16, #tpu.memory_space<vmem>>, vector<1x64x128xbf16>
    %77 = vector.shape_cast %76 : vector<1x64x128xbf16> to vector<64x128xbf16>
    %cst_58 = arith.constant dense<0.000000e+00> : vector<7x128xf32>
    %78 = tpu.matmul %75, %77, %cst_58 {dimension_numbers = #tpu.dot_dimension_numbers<[1], [0], [0], [1], [0, 0, 1, 1], [], []>} : vector<7x64xbf16>, vector<64x128xbf16>, vector<7x128xf32> -> vector<7x128xf32>
    %79 = arith.addf %74, %78 : vector<7x128xf32>
    %80 = vector.extract_strided_slice %49 {offsets = [1, 0], sizes = [7, 64], strides = [1, 1]} : vector<8x64xbf16> to vector<7x64xbf16>
    %c2_59 = arith.constant 2 : index
    %c0_60 = arith.constant 0 : index
    %c0_61 = arith.constant 0 : index
    %81 = vector.load %arg9[%c2_59, %c0_60, %c0_61] : memref<3x64x128xbf16, #tpu.memory_space<vmem>>, vector<1x64x128xbf16>
    %82 = vector.shape_cast %81 : vector<1x64x128xbf16> to vector<64x128xbf16>
    %cst_62 = arith.constant dense<0.000000e+00> : vector<7x128xf32>
    %83 = tpu.matmul %80, %82, %cst_62 {dimension_numbers = #tpu.dot_dimension_numbers<[1], [0], [0], [1], [0, 0, 1, 1], [], []>} : vector<7x64xbf16>, vector<64x128xbf16>, vector<7x128xf32> -> vector<7x128xf32>
    %84 = arith.addf %79, %83 : vector<7x128xf32>
    %85 = vector.broadcast %3 : vector<1x128xf32> to vector<7x128xf32>
    %86 = arith.mulf %84, %85 : vector<7x128xf32>
    %87 = vector.broadcast %4 : vector<1x128xf32> to vector<7x128xf32>
    %88 = arith.addf %86, %87 : vector<7x128xf32>
    %cst_63 = arith.constant 0.000000e+00 : f32
    %89 = vector.broadcast %cst_63 : f32 to vector<7x128xf32>
    %90 = arith.maximumf %88, %89 : vector<7x128xf32>
    %c0_64 = arith.constant 0 : index
    %c0_65 = arith.constant 0 : index
    %c0_66 = arith.constant 0 : index
    %c0_67 = arith.constant 0 : index
    %91 = vector.load %arg12[%c0_64, %c0_65, %c0_66, %c0_67] : memref<1x2x7x128xf32, #tpu.memory_space<vmem>>, vector<1x1x7x128xf32>
    %92 = vector.shape_cast %91 : vector<1x1x7x128xf32> to vector<7x128xf32>
    %93 = vector.shape_cast %90 : vector<7x128xf32> to vector<1x1x7x128xf32>
    tpu.vector_store %arg12[%c0_64, %c0_65, %c0_66, %c0_67], %93 {strides = array<i32>} : memref<1x2x7x128xf32, #tpu.memory_space<vmem>>, vector<1x1x7x128xf32>,
    %94 = vector.extract_strided_slice %70 {offsets = [0, 0], sizes = [7, 64], strides = [1, 1]} : vector<8x64xbf16> to vector<7x64xbf16>
    %c0_68 = arith.constant 0 : index
    %c0_69 = arith.constant 0 : index
    %c0_70 = arith.constant 0 : index
    %95 = vector.load %arg9[%c0_68, %c0_69, %c0_70] : memref<3x64x128xbf16, #tpu.memory_space<vmem>>, vector<1x64x128xbf16>
    %96 = vector.shape_cast %95 : vector<1x64x128xbf16> to vector<64x128xbf16>
    %cst_71 = arith.constant dense<0.000000e+00> : vector<7x128xf32>
    %97 = tpu.matmul %94, %96, %cst_71 {dimension_numbers = #tpu.dot_dimension_numbers<[1], [0], [0], [1], [0, 0, 1, 1], [], []>} : vector<7x64xbf16>, vector<64x128xbf16>, vector<7x128xf32> -> vector<7x128xf32>
    %98 = vector.extract_strided_slice %49 {offsets = [1, 0], sizes = [7, 64], strides = [1, 1]} : vector<8x64xbf16> to vector<7x64xbf16>
    %c1_72 = arith.constant 1 : index
    %c0_73 = arith.constant 0 : index
    %c0_74 = arith.constant 0 : index
    %99 = vector.load %arg9[%c1_72, %c0_73, %c0_74] : memref<3x64x128xbf16, #tpu.memory_space<vmem>>, vector<1x64x128xbf16>
    %100 = vector.shape_cast %99 : vector<1x64x128xbf16> to vector<64x128xbf16>
    %cst_75 = arith.constant dense<0.000000e+00> : vector<7x128xf32>
    %101 = tpu.matmul %98, %100, %cst_75 {dimension_numbers = #tpu.dot_dimension_numbers<[1], [0], [0], [1], [0, 0, 1, 1], [], []>} : vector<7x64xbf16>, vector<64x128xbf16>, vector<7x128xf32> -> vector<7x128xf32>
    %102 = arith.addf %97, %101 : vector<7x128xf32>
    %103 = vector.extract_strided_slice %70 {offsets = [1, 0], sizes = [7, 64], strides = [1, 1]} : vector<8x64xbf16> to vector<7x64xbf16>
    %c2_76 = arith.constant 2 : index
    %c0_77 = arith.constant 0 : index
    %c0_78 = arith.constant 0 : index
    %104 = vector.load %arg9[%c2_76, %c0_77, %c0_78] : memref<3x64x128xbf16, #tpu.memory_space<vmem>>, vector<1x64x128xbf16>
    %105 = vector.shape_cast %104 : vector<1x64x128xbf16> to vector<64x128xbf16>
    %cst_79 = arith.constant dense<0.000000e+00> : vector<7x128xf32>
    %106 = tpu.matmul %103, %105, %cst_79 {dimension_numbers = #tpu.dot_dimension_numbers<[1], [0], [0], [1], [0, 0, 1, 1], [], []>} : vector<7x64xbf16>, vector<64x128xbf16>, vector<7x128xf32> -> vector<7x128xf32>
    %107 = arith.addf %102, %106 : vector<7x128xf32>
    %108 = vector.broadcast %3 : vector<1x128xf32> to vector<7x128xf32>
    %109 = arith.mulf %107, %108 : vector<7x128xf32>
    %110 = vector.broadcast %4 : vector<1x128xf32> to vector<7x128xf32>
    %111 = arith.addf %109, %110 : vector<7x128xf32>
    %cst_80 = arith.constant 0.000000e+00 : f32
    %112 = vector.broadcast %cst_80 : f32 to vector<7x128xf32>
    %113 = arith.maximumf %111, %112 : vector<7x128xf32>
    %c0_81 = arith.constant 0 : index
    %c1_82 = arith.constant 1 : index
    %c0_83 = arith.constant 0 : index
    %c0_84 = arith.constant 0 : index
    %114 = vector.load %arg12[%c0_81, %c1_82, %c0_83, %c0_84] : memref<1x2x7x128xf32, #tpu.memory_space<vmem>>, vector<1x1x7x128xf32>
    %115 = vector.shape_cast %114 : vector<1x1x7x128xf32> to vector<7x128xf32>
    %116 = vector.shape_cast %113 : vector<7x128xf32> to vector<1x1x7x128xf32>
    tpu.vector_store %arg12[%c0_81, %c1_82, %c0_83, %c0_84], %116 {strides = array<i32>} : memref<1x2x7x128xf32, #tpu.memory_space<vmem>>, vector<1x1x7x128xf32>,
    return
  }
  func.func @transform_0(%arg0: i32) -> (i32, i32, i32) {
    %c0_i32 = arith.constant 0 : i32
    %c0_i32_0 = arith.constant 0 : i32
    %c0_i32_1 = arith.constant 0 : i32
    return %arg0, %c0_i32, %c0_i32_0 : i32, i32, i32
  }
  func.func @transform_1(%arg0: i32) -> (i32, i32, i32) {
    %c0_i32 = arith.constant 0 : i32
    %c0_i32_0 = arith.constant 0 : i32
    %c0_i32_1 = arith.constant 0 : i32
    return %arg0, %c0_i32, %c0_i32_0 : i32, i32, i32
  }
  func.func @transform_2(%arg0: i32) -> (i32, i32, i32) {
    %c0_i32 = arith.constant 0 : i32
    %c0_i32_0 = arith.constant 0 : i32
    %c0_i32_1 = arith.constant 0 : i32
    return %arg0, %c0_i32, %c0_i32_0 : i32, i32, i32
  }
  func.func @transform_3(%arg0: i32) -> (i32, i32, i32) {
    %c0_i32 = arith.constant 0 : i32
    %c0_i32_0 = arith.constant 0 : i32
    %c0_i32_1 = arith.constant 0 : i32
    %c0_i32_2 = arith.constant 0 : i32
    return %c0_i32, %c0_i32_0, %c0_i32_1 : i32, i32, i32
  }
  func.func @transform_4(%arg0: i32) -> (i32, i32) {
    %c0_i32 = arith.constant 0 : i32
    %c0_i32_0 = arith.constant 0 : i32
    %c0_i32_1 = arith.constant 0 : i32
    return %c0_i32, %c0_i32_0 : i32, i32
  }
  func.func @transform_5(%arg0: i32) -> (i32, i32, i32) {
    %c0_i32 = arith.constant 0 : i32
    %c0_i32_0 = arith.constant 0 : i32
    %c0_i32_1 = arith.constant 0 : i32
    %c0_i32_2 = arith.constant 0 : i32
    return %c0_i32, %c0_i32_0, %c0_i32_1 : i32, i32, i32
  }
  func.func @transform_6(%arg0: i32) -> (i32, i32) {
    %c0_i32 = arith.constant 0 : i32
    %c0_i32_0 = arith.constant 0 : i32
    %c0_i32_1 = arith.constant 0 : i32
    return %c0_i32, %c0_i32_0 : i32, i32
  }
  func.func @transform_7(%arg0: i32) -> (i32, i32) {
    %c0_i32 = arith.constant 0 : i32
    %c0_i32_0 = arith.constant 0 : i32
    %c0_i32_1 = arith.constant 0 : i32
    return %c0_i32, %c0_i32_0 : i32, i32
  }
  func.func @transform_8(%arg0: i32) -> (i32, i32, i32) {
    %c0_i32 = arith.constant 0 : i32
    %c0_i32_0 = arith.constant 0 : i32
    %c0_i32_1 = arith.constant 0 : i32
    %c0_i32_2 = arith.constant 0 : i32
    return %c0_i32, %c0_i32_0, %c0_i32_1 : i32, i32, i32
  }
  func.func @transform_9(%arg0: i32) -> (i32, i32) {
    %c0_i32 = arith.constant 0 : i32
    %c0_i32_0 = arith.constant 0 : i32
    %c0_i32_1 = arith.constant 0 : i32
    return %c0_i32, %c0_i32_0 : i32, i32
  }
  func.func @transform_10(%arg0: i32) -> (i32, i32) {
    %c0_i32 = arith.constant 0 : i32
    %c0_i32_0 = arith.constant 0 : i32
    %c0_i32_1 = arith.constant 0 : i32
    return %c0_i32, %c0_i32_0 : i32, i32
  }
  func.func @transform_11(%arg0: i32) -> (i32, i32, i32, i32) {
    %c0_i32 = arith.constant 0 : i32
    %c0_i32_0 = arith.constant 0 : i32
    %c0_i32_1 = arith.constant 0 : i32
    %c0_i32_2 = arith.constant 0 : i32
    return %arg0, %c0_i32, %c0_i32_0, %c0_i32_1 : i32, i32, i32, i32
  }
}

</mosaic_0001>

<llo_original>
// kernel: tile.48
$region0: #{tile.48}
  #allocation0 [shape = 's32[1]{0}', space=sflag, size = 0x4, scoped, tag = 'scoped memory for tile.48']
  %s0 = inlined_call_operand.vmem [shape: f32[4], index: 0, kind: input, shape index: {}]
  %s1 = inlined_call_operand.vmem [shape: f32[14,4], index: 1, kind: output, shape index: {}]
  // Predicated region
  $region2: #{tile.48} parent=0 // pred_check
    _
  $region3: #{tile.48} parent=0 // pred_check_branch
    %3 = sbr.rel (0) target = $region5
  $region4: #{tile.48} parent=0 // pred_region
    _
  $region5: #{tile.48} parent=0 // pred_fallthru
    _
  %v4 = vld [vmem:[%s0] ss:$0 sm:$0xff]
  %5 = vst [vmem:[%s1] sm:$0xff] %v4
  %s6 = scalar_lea.vmem %s1, 8
  %7 = vst [vmem:[%s6] sm:$0xff] %v4

// kernel: tile.49
$region0: #{tile.49}
  %s0 = inlined_call_operand.vmem [shape: f32[14,4], index: 0, kind: input, shape index: {}]
  %s1 = inlined_call_operand.vmem [shape: f32[56], index: 1, kind: output, shape index: {}]
  $region1: #{tile.49} parent=0
    #allocation0 [shape = 'u8[4096]{0}', space=vmem, size = 0x1000, scoped, tag = 'scoped mem for output reshape']
    %v2 = vld [vmem:[%s0] sm:$0x1]
    %vm3 = vcmask 31744
    %4 = vst.msk [vmem:[#allocation0] sm:$0x1] %vm3, %v2
    %s5 = scalar_lea.vmem %s0, 13
    %v6 = vld [vmem:[%s5] sm:$0x1]
    %7 = vrot.lane.b32.xlu0 %v6, 52
    %v8 = vpop.permute.xlu0 %7
    %vm9 = vcmask 458144
    %10 = vst.msk [vmem:[#allocation0] sm:$0x1] %vm9, %v8
    %s11 = scalar_lea.vmem %s0, 12
    %v12 = vld [vmem:[%s11] sm:$0x1]
    %13 = vrot.lane.b32.xlu0 %v12, 48
    %v14 = vpop.permute.xlu0 %13
    %vm15 = vcmask 425344
    %16 = vst.msk [vmem:[#allocation0] sm:$0x1] %vm15, %v14
    %s17 = scalar_lea.vmem %s0, 11
    %v18 = vld [vmem:[%s17] sm:$0x1]
    %19 = vrot.lane.b32.xlu0 %v18, 44
    %v20 = vpop.permute.xlu0 %19
    %vm21 = vcmask 392544
    %22 = vst.msk [vmem:[#allocation0] sm:$0x1] %vm21, %v20
    %s23 = scalar_lea.vmem %s0, 10
    %v24 = vld [vmem:[%s23] sm:$0x1]
    %25 = vrot.lane.b32.xlu0 %v24, 40
    %v26 = vpop.permute.xlu0 %25
    %vm27 = vcmask 359744
    %28 = vst.msk [vmem:[#allocation0] sm:$0x1] %vm27, %v26
    %s29 = scalar_lea.vmem %s0, 9
    %v30 = vld [vmem:[%s29] sm:$0x1]
    %31 = vrot.lane.b32.xlu0 %v30, 36
    %v32 = vpop.permute.xlu0 %31
    %vm33 = vcmask 326944
    %34 = vst.msk [vmem:[#allocation0] sm:$0x1] %vm33, %v32
    %s35 = scalar_lea.vmem %s0, 8
    %v36 = vld [vmem:[%s35] sm:$0x1]
    %37 = vrot.lane.b32.xlu0 %v36, 32
    %v38 = vpop.permute.xlu0 %37
    %vm39 = vcmask 294144
    %40 = vst.msk [vmem:[#allocation0] sm:$0x1] %vm39, %v38
    %s41 = scalar_lea.vmem %s0, 7
    %v42 = vld [vmem:[%s41] sm:$0x1]
    %43 = vrot.lane.b32.xlu0 %v42, 28
    %v44 = vpop.permute.xlu0 %43
    %vm45 = vcmask 261344
    %46 = vst.msk [vmem:[#allocation0] sm:$0x1] %vm45, %v44
    %s47 = scalar_lea.vmem %s0, 6
    %v48 = vld [vmem:[%s47] sm:$0x1]
    %49 = vrot.lane.b32.xlu0 %v48, 24
    %v50 = vpop.permute.xlu0 %49
    %vm51 = vcmask 228544
    %52 = vst.msk [vmem:[#allocation0] sm:$0x1] %vm51, %v50
    %s53 = scalar_lea.vmem %s0, 5
    %v54 = vld [vmem:[%s53] sm:$0x1]
    %55 = vrot.lane.b32.xlu0 %v54, 20
    %v56 = vpop.permute.xlu0 %55
    %vm57 = vcmask 195744
    %58 = vst.msk [vmem:[#allocation0] sm:$0x1] %vm57, %v56
    %s59 = scalar_lea.vmem %s0, 4
    %v60 = vld [vmem:[%s59] sm:$0x1]
    %61 = vrot.lane.b32.xlu0 %v60, 16
    %v62 = vpop.permute.xlu0 %61
    %vm63 = vcmask 162944
    %64 = vst.msk [vmem:[#allocation0] sm:$0x1] %vm63, %v62
    %s65 = scalar_lea.vmem %s0, 3
    %v66 = vld [vmem:[%s65] sm:$0x1]
    %67 = vrot.lane.b32.xlu0 %v66, 12
    %v68 = vpop.permute.xlu0 %67
    %vm69 = vcmask 130144
    %70 = vst.msk [vmem:[#allocation0] sm:$0x1] %vm69, %v68
    %s71 = scalar_lea.vmem %s0, 2
    %v72 = vld [vmem:[%s71] sm:$0x1]
    %73 = vrot.lane.b32.xlu0 %v72, 8
    %v74 = vpop.permute.xlu0 %73
    %vm75 = vcmask 97344
    %76 = vst.msk [vmem:[#allocation0] sm:$0x1] %vm75, %v74
    %s77 = scalar_lea.vmem %s0, 1
    %v78 = vld [vmem:[%s77] sm:$0x1]
    %79 = vrot.lane.b32.xlu0 %v78, 4
    %v80 = vpop.permute.xlu0 %79
    %vm81 = vcmask 64544
    %82 = vst.msk [vmem:[#allocation0] sm:$0x1] %vm81, %v80
    %s84 = ssub.s32 2, 1
    %v85 = vld [vmem:[#allocation0] sm:%s84]
    %s87 = ssub.s32 2, 1
    %88 = vst [vmem:[%s1] sm:%s87] %v85

// kernel: tile.33
$region0: #{tile.33}
  #allocation0 [shape = 's32[1]{0}', space=sflag, size = 0x4, scoped, tag = 'scoped memory for tile.33']
  %s0 = inlined_call_operand.vmem [shape: f32[4], index: 0, kind: input, shape index: {}]
  %s1 = inlined_call_operand.vmem [shape: f32[16,4], index: 1, kind: output, shape index: {}]
  // Predicated region
  $region2: #{tile.33} parent=0 // pred_check
    _
  $region3: #{tile.33} parent=0 // pred_check_branch
    %3 = sbr.rel (0) target = $region5
  $region4: #{tile.33} parent=0 // pred_region
    _
  $region5: #{tile.33} parent=0 // pred_fallthru
    _
  %v4 = vld [vmem:[%s0] ss:$0 sm:$0xff]
  %5 = vst [vmem:[%s1] sm:$0xff] %v4
  %s6 = scalar_lea.vmem %s1, 8
  %7 = vst [vmem:[%s6] sm:$0xff] %v4

// kernel: tile.34
$region0: #{tile.34}
  %s0 = inlined_call_operand.vmem [shape: f32[16,4], index: 0, kind: input, shape index: {}]
  %s1 = inlined_call_operand.vmem [shape: f32[1,64], index: 1, kind: output, shape index: {}]
  $region1: #{tile.34} parent=0
    #allocation0 [shape = 'u8[4096]{0}', space=vmem, size = 0x1000, scoped, tag = 'scoped mem for output reshape']
    %v2 = vld [vmem:[%s0] sm:$0x1]
    %vm3 = vcmask 31744
    %4 = vst.msk [vmem:[#allocation0] sm:$0x1] %vm3, %v2
    %s5 = scalar_lea.vmem %s0, 15
    %v6 = vld [vmem:[%s5] sm:$0x1]
    %7 = vrot.lane.b32.xlu0 %v6, 60
    %v8 = vpop.permute.xlu0 %7
    %vm9 = vcmask 523744
    %10 = vst.msk [vmem:[#allocation0] sm:$0x1] %vm9, %v8
    %s11 = scalar_lea.vmem %s0, 14
    %v12 = vld [vmem:[%s11] sm:$0x1]
    %13 = vrot.lane.b32.xlu0 %v12, 56
    %v14 = vpop.permute.xlu0 %13
    %vm15 = vcmask 490944
    %16 = vst.msk [vmem:[#allocation0] sm:$0x1] %vm15, %v14
    %s17 = scalar_lea.vmem %s0, 13
    %v18 = vld [vmem:[%s17] sm:$0x1]
    %19 = vrot.lane.b32.xlu0 %v18, 52
    %v20 = vpop.permute.xlu0 %19
    %vm21 = vcmask 458144
    %22 = vst.msk [vmem:[#allocation0] sm:$0x1] %vm21, %v20
    %s23 = scalar_lea.vmem %s0, 12
    %v24 = vld [vmem:[%s23] sm:$0x1]
    %25 = vrot.lane.b32.xlu0 %v24, 48
    %v26 = vpop.permute.xlu0 %25
    %vm27 = vcmask 425344
    %28 = vst.msk [vmem:[#allocation0] sm:$0x1] %vm27, %v26
    %s29 = scalar_lea.vmem %s0, 11
    %v30 = vld [vmem:[%s29] sm:$0x1]
    %31 = vrot.lane.b32.xlu0 %v30, 44
    %v32 = vpop.permute.xlu0 %31
    %vm33 = vcmask 392544
    %34 = vst.msk [vmem:[#allocation0] sm:$0x1] %vm33, %v32
    %s35 = scalar_lea.vmem %s0, 10
    %v36 = vld [vmem:[%s35] sm:$0x1]
    %37 = vrot.lane.b32.xlu0 %v36, 40
    %v38 = vpop.permute.xlu0 %37
    %vm39 = vcmask 359744
    %40 = vst.msk [vmem:[#allocation0] sm:$0x1] %vm39, %v38
    %s41 = scalar_lea.vmem %s0, 9
    %v42 = vld [vmem:[%s41] sm:$0x1]
    %43 = vrot.lane.b32.xlu0 %v42, 36
    %v44 = vpop.permute.xlu0 %43
    %vm45 = vcmask 326944
    %46 = vst.msk [vmem:[#allocation0] sm:$0x1] %vm45, %v44
    %s47 = scalar_lea.vmem %s0, 8
    %v48 = vld [vmem:[%s47] sm:$0x1]
    %49 = vrot.lane.b32.xlu0 %v48, 32
    %v50 = vpop.permute.xlu0 %49
    %vm51 = vcmask 294144
    %52 = vst.msk [vmem:[#allocation0] sm:$0x1] %vm51, %v50
    %s53 = scalar_lea.vmem %s0, 7
    %v54 = vld [vmem:[%s53] sm:$0x1]
    %55 = vrot.lane.b32.xlu0 %v54, 28
    %v56 = vpop.permute.xlu0 %55
    %vm57 = vcmask 261344
    %58 = vst.msk [vmem:[#allocation0] sm:$0x1] %vm57, %v56
    %s59 = scalar_lea.vmem %s0, 6
    %v60 = vld [vmem:[%s59] sm:$0x1]
    %61 = vrot.lane.b32.xlu0 %v60, 24
    %v62 = vpop.permute.xlu0 %61
    %vm63 = vcmask 228544
    %64 = vst.msk [vmem:[#allocation0] sm:$0x1] %vm63, %v62
    %s65 = scalar_lea.vmem %s0, 5
    %v66 = vld [vmem:[%s65] sm:$0x1]
    %67 = vrot.lane.b32.xlu0 %v66, 20
    %v68 = vpop.permute.xlu0 %67
    %vm69 = vcmask 195744
    %70 = vst.msk [vmem:[#allocation0] sm:$0x1] %vm69, %v68
    %s71 = scalar_lea.vmem %s0, 4
    %v72 = vld [vmem:[%s71] sm:$0x1]
    %73 = vrot.lane.b32.xlu0 %v72, 16
    %v74 = vpop.permute.xlu0 %73
    %vm75 = vcmask 162944
    %76 = vst.msk [vmem:[#allocation0] sm:$0x1] %vm75, %v74
    %s77 = scalar_lea.vmem %s0, 3
    %v78 = vld [vmem:[%s77] sm:$0x1]
    %79 = vrot.lane.b32.xlu0 %v78, 12
    %v80 = vpop.permute.xlu0 %79
    %vm81 = vcmask 130144
    %82 = vst.msk [vmem:[#allocation0] sm:$0x1] %vm81, %v80
    %s83 = scalar_lea.vmem %s0, 2
    %v84 = vld [vmem:[%s83] sm:$0x1]
    %85 = vrot.lane.b32.xlu0 %v84, 8
    %v86 = vpop.permute.xlu0 %85
    %vm87 = vcmask 97344
    %88 = vst.msk [vmem:[#allocation0] sm:$0x1] %vm87, %v86
    %s89 = scalar_lea.vmem %s0, 1
    %v90 = vld [vmem:[%s89] sm:$0x1]
    %91 = vrot.lane.b32.xlu0 %v90, 4
    %v92 = vpop.permute.xlu0 %91
    %vm93 = vcmask 64544
    %94 = vst.msk [vmem:[#allocation0] sm:$0x1] %vm93, %v92
    %s96 = ssub.s32 2, 1
    %v97 = vld [vmem:[#allocation0] sm:%s96]
    %s99 = ssub.s32 2, 1
    %100 = vst [vmem:[%s1] sm:%s99] %v97

// kernel: upsamp_forward.1
$region0: #{upsamp_forward.1}
  #allocation0 [shape = 'u32[]', space=smem, size = 0x4, offset = 0x4, fixed_abs, tag = 'smem constant byte address 0x4 - core index']
  #allocation1 [shape = 'u32[72,128]{1,0:T(1,128)}', space=vmem, size = 0x9000, scoped, tag = 'internal scratch']
  %s0 = inlined_call_operand.vmem [shape: bf16[2,9,72], index: 0, kind: input, shape index: {}]
  %s1 = inlined_call_operand.vmem [shape: bf16[2,9,72], index: 1, kind: input, shape index: {}]
  %s2 = inlined_call_operand.vmem [shape: bf16[2,8,64], index: 2, kind: input, shape index: {}]
  %s3 = inlined_call_operand.vmem [shape: bf16[2,64,72], index: 3, kind: input, shape index: {}]
  %s4 = inlined_call_operand.vmem [shape: f32[1,72], index: 4, kind: input, shape index: {}]
  %s5 = inlined_call_operand.vmem [shape: bf16[3,144,64], index: 5, kind: input, shape index: {}]
  %s6 = inlined_call_operand.vmem [shape: f32[1,64], index: 6, kind: input, shape index: {}]
  %s7 = inlined_call_operand.vmem [shape: f32[1,64], index: 7, kind: input, shape index: {}]
  %s8 = inlined_call_operand.vmem [shape: bf16[3,64,128], index: 8, kind: input, shape index: {}]
  %s9 = inlined_call_operand.vmem [shape: f32[1,128], index: 9, kind: input, shape index: {}]
  %s10 = inlined_call_operand.vmem [shape: f32[1,128], index: 10, kind: input, shape index: {}]
  %s11 = inlined_call_operand.vmem [shape: f32[2,2,7,128], index: 11, kind: output, shape index: {}]
  %s12 = sld [smem:[#allocation0]]
  $region77: #{upsamp_forward.1} parent=0
    _
  %s14 = ssub.s32 1, %s12
  %s15 = scalar_select 0, %s14, %s12
  loop: start=0, step=1, limit=4
  $region2: #{upsamp_forward.1} parent=0 // loop_pre_header
    _
  $region3: #{upsamp_forward.1} parent=0 // loop_header
    %s17 = sphi 0, %s21
    %p18 = scmp.ge.s32.totalorder %s17, 4
    %s27 = sphi 0, %s29
    %s30 = sphi 0, %s27
    %s31 = sphi 0, %s30
    %s47 = sphi 0, %s31
    %s53 = sphi 0, %s55
    %s56 = sphi 0, %s53
    %s57 = sphi 0, %s56
    %s73 = sphi 0, %s57
    %s79 = sphi 0, %s81
    %s82 = sphi 0, %s79
    %s83 = sphi 0, %s82
    %s99 = sphi 0, %s83
    %s103 = sphi 0, %s103
    %s105 = sphi 0, %s103
    %s106 = sphi 0, %s105
    %s120 = sphi 0, %s106
    %s124 = sphi 0, %s124
    %s126 = sphi 0, %s124
    %s127 = sphi 0, %s126
    %s141 = sphi 0, %s127
    %s145 = sphi 0, %s145
    %s147 = sphi 0, %s145
    %s148 = sphi 0, %s147
    %s162 = sphi 0, %s148
    %s166 = sphi 0, %s166
    %s168 = sphi 0, %s166
    %s169 = sphi 0, %s168
    %s183 = sphi 0, %s169
    %s187 = sphi 0, %s187
    %s189 = sphi 0, %s187
    %s190 = sphi 0, %s189
    %s204 = sphi 0, %s190
    %s208 = sphi 0, %s208
    %s210 = sphi 0, %s208
    %s211 = sphi 0, %s210
    %s225 = sphi 0, %s211
    %s229 = sphi 0, %s229
    %s231 = sphi 0, %s229
    %s232 = sphi 0, %s231
    %s246 = sphi 0, %s232
    %s250 = sphi 0, %s250
    %s252 = sphi 0, %s250
    %s253 = sphi 0, %s252
    %s267 = sphi 0, %s253
    %s273 = sphi 0, %s275
    %s276 = sphi 0, %s273
    %s277 = sphi 0, %s276
    %s293 = sphi 0, %s277
  $region4: #{upsamp_forward.1} parent=0 // loop_header_branch
    %20 = sbr.rel (%p18) target = $region8
  $region5: #{upsamp_forward.1} parent=0 // loop_body
    %s22 = ssub.s32 %s17, 1
    %s23 = ssub.s32 %s17, 2
    %s24 = sadd.s32 %s17, 1
    %s25 = ssub.s32 %s17, %s24
    %p26 = scmp.eq.s32.totalorder %s25, 0
    %s28 = sadd.s32 %s27, 1
    %s29 = scalar_select %p26, %s27, %s28
    %p32 = pneg %p26
    %p33 = scmp.eq.s32.totalorder %s17, 1
    %p34 = por %p32, %p33
    %p35 = scmp.ne.s32.totalorder %s27, %s30
    %p36 = scmp.eq.s32.totalorder %s17, 0
    %p37 = por %p35, %p36
    %p38 = scmp.ne.s32.totalorder %s27, %s30
    %p39 = scmp.eq.s32.totalorder %s22, 1
    %p40 = por %p38, %p39
    %p41 = scmp.ne.s32.totalorder %s30, %s31
    %p42 = scmp.eq.s32.totalorder %s22, 0
    %p43 = por %p41, %p42
    %p44 = scmp.ne.s32.totalorder %s30, %s31
    %p45 = scmp.eq.s32.totalorder %s23, 1
    %p46 = por %p44, %p45
    %p48 = scmp.ne.s32.totalorder %s31, %s47
    %p49 = scmp.eq.s32.totalorder %s23, 0
    %p50 = por %p48, %p49
    %s51 = ssub.s32 %s17, %s24
    %p52 = scmp.eq.s32.totalorder %s51, 0
    %s54 = sadd.s32 %s53, 1
    %s55 = scalar_select %p52, %s53, %s54
    %p58 = pneg %p52
    %p59 = scmp.eq.s32.totalorder %s17, 1
    %p60 = por %p58, %p59
    %p61 = scmp.ne.s32.totalorder %s53, %s56
    %p62 = scmp.eq.s32.totalorder %s17, 0
    %p63 = por %p61, %p62
    %p64 = scmp.ne.s32.totalorder %s53, %s56
    %p65 = scmp.eq.s32.totalorder %s22, 1
    %p66 = por %p64, %p65
    %p67 = scmp.ne.s32.totalorder %s56, %s57
    %p68 = scmp.eq.s32.totalorder %s22, 0
    %p69 = por %p67, %p68
    %p70 = scmp.ne.s32.totalorder %s56, %s57
    %p71 = scmp.eq.s32.totalorder %s23, 1
    %p72 = por %p70, %p71
    %p74 = scmp.ne.s32.totalorder %s57, %s73
    %p75 = scmp.eq.s32.totalorder %s23, 0
    %p76 = por %p74, %p75
    %s77 = ssub.s32 %s17, %s24
    %p78 = scmp.eq.s32.totalorder %s77, 0
    %s80 = sadd.s32 %s79, 1
    %s81 = scalar_select %p78, %s79, %s80
    %p84 = pneg %p78
    %p85 = scmp.eq.s32.totalorder %s17, 1
    %p86 = por %p84, %p85
    %p87 = scmp.ne.s32.totalorder %s79, %s82
    %p88 = scmp.eq.s32.totalorder %s17, 0
    %p89 = por %p87, %p88
    %p90 = scmp.ne.s32.totalorder %s79, %s82
    %p91 = scmp.eq.s32.totalorder %s22, 1
    %p92 = por %p90, %p91
    %p93 = scmp.ne.s32.totalorder %s82, %s83
    %p94 = scmp.eq.s32.totalorder %s22, 0
    %p95 = por %p93, %p94
    %p96 = scmp.ne.s32.totalorder %s82, %s83
    %p97 = scmp.eq.s32.totalorder %s23, 1
    %p98 = por %p96, %p97
    %p100 = scmp.ne.s32.totalorder %s83, %s99
    %p101 = scmp.eq.s32.totalorder %s23, 0
    %p102 = por %p100, %p101
    %s104 = sadd.s32 %s103, 1
    %p107 = scmp.eq.s32.totalorder %s17, 1
    %p108 = scmp.ne.s32.totalorder %s103, %s105
    %p109 = scmp.eq.s32.totalorder %s17, 0
    %p110 = por %p108, %p109
    %p111 = scmp.ne.s32.totalorder %s103, %s105
    %p112 = scmp.eq.s32.totalorder %s22, 1
    %p113 = por %p111, %p112
    %p114 = scmp.ne.s32.totalorder %s105, %s106
    %p115 = scmp.eq.s32.totalorder %s22, 0
    %p116 = por %p114, %p115
    %p117 = scmp.ne.s32.totalorder %s105, %s106
    %p118 = scmp.eq.s32.totalorder %s23, 1
    %p119 = por %p117, %p118
    %p121 = scmp.ne.s32.totalorder %s106, %s120
    %p122 = scmp.eq.s32.totalorder %s23, 0
    %p123 = por %p121, %p122
    %s125 = sadd.s32 %s124, 1
    %p128 = scmp.eq.s32.totalorder %s17, 1
    %p129 = scmp.ne.s32.totalorder %s124, %s126
    %p130 = scmp.eq.s32.totalorder %s17, 0
    %p131 = por %p129, %p130
    %p132 = scmp.ne.s32.totalorder %s124, %s126
    %p133 = scmp.eq.s32.totalorder %s22, 1
    %p134 = por %p132, %p133
    %p135 = scmp.ne.s32.totalorder %s126, %s127
    %p136 = scmp.eq.s32.totalorder %s22, 0
    %p137 = por %p135, %p136
    %p138 = scmp.ne.s32.totalorder %s126, %s127
    %p139 = scmp.eq.s32.totalorder %s23, 1
    %p140 = por %p138, %p139
    %p142 = scmp.ne.s32.totalorder %s127, %s141
    %p143 = scmp.eq.s32.totalorder %s23, 0
    %p144 = por %p142, %p143
    %s146 = sadd.s32 %s145, 1
    %p149 = scmp.eq.s32.totalorder %s17, 1
    %p150 = scmp.ne.s32.totalorder %s145, %s147
    %p151 = scmp.eq.s32.totalorder %s17, 0
    %p152 = por %p150, %p151
    %p153 = scmp.ne.s32.totalorder %s145, %s147
    %p154 = scmp.eq.s32.totalorder %s22, 1
    %p155 = por %p153, %p154
    %p156 = scmp.ne.s32.totalorder %s147, %s148
    %p157 = scmp.eq.s32.totalorder %s22, 0
    %p158 = por %p156, %p157
    %p159 = scmp.ne.s32.totalorder %s147, %s148
    %p160 = scmp.eq.s32.totalorder %s23, 1
    %p161 = por %p159, %p160
    %p163 = scmp.ne.s32.totalorder %s148, %s162
    %p164 = scmp.eq.s32.totalorder %s23, 0
    %p165 = por %p163, %p164
    %s167 = sadd.s32 %s166, 1
    %p170 = scmp.eq.s32.totalorder %s17, 1
    %p171 = scmp.ne.s32.totalorder %s166, %s168
    %p172 = scmp.eq.s32.totalorder %s17, 0
    %p173 = por %p171, %p172
    %p174 = scmp.ne.s32.totalorder %s166, %s168
    %p175 = scmp.eq.s32.totalorder %s22, 1
    %p176 = por %p174, %p175
    %p177 = scmp.ne.s32.totalorder %s168, %s169
    %p178 = scmp.eq.s32.totalorder %s22, 0
    %p179 = por %p177, %p178
    %p180 = scmp.ne.s32.totalorder %s168, %s169
    %p181 = scmp.eq.s32.totalorder %s23, 1
    %p182 = por %p180, %p181
    %p184 = scmp.ne.s32.totalorder %s169, %s183
    %p185 = scmp.eq.s32.totalorder %s23, 0
    %p186 = por %p184, %p185
    %s188 = sadd.s32 %s187, 1
    %p191 = scmp.eq.s32.totalorder %s17, 1
    %p192 = scmp.ne.s32.totalorder %s187, %s189
    %p193 = scmp.eq.s32.totalorder %s17, 0
    %p194 = por %p192, %p193
    %p195 = scmp.ne.s32.totalorder %s187, %s189
    %p196 = scmp.eq.s32.totalorder %s22, 1
    %p197 = por %p195, %p196
    %p198 = scmp.ne.s32.totalorder %s189, %s190
    %p199 = scmp.eq.s32.totalorder %s22, 0
    %p200 = por %p198, %p199
    %p201 = scmp.ne.s32.totalorder %s189, %s190
    %p202 = scmp.eq.s32.totalorder %s23, 1
    %p203 = por %p201, %p202
    %p205 = scmp.ne.s32.totalorder %s190, %s204
    %p206 = scmp.eq.s32.totalorder %s23, 0
    %p207 = por %p205, %p206
    %s209 = sadd.s32 %s208, 1
    %p212 = scmp.eq.s32.totalorder %s17, 1
    %p213 = scmp.ne.s32.totalorder %s208, %s210
    %p214 = scmp.eq.s32.totalorder %s17, 0
    %p215 = por %p213, %p214
    %p216 = scmp.ne.s32.totalorder %s208, %s210
    %p217 = scmp.eq.s32.totalorder %s22, 1
    %p218 = por %p216, %p217
    %p219 = scmp.ne.s32.totalorder %s210, %s211
    %p220 = scmp.eq.s32.totalorder %s22, 0
    %p221 = por %p219, %p220
    %p222 = scmp.ne.s32.totalorder %s210, %s211
    %p223 = scmp.eq.s32.totalorder %s23, 1
    %p224 = por %p222, %p223
    %p226 = scmp.ne.s32.totalorder %s211, %s225
    %p227 = scmp.eq.s32.totalorder %s23, 0
    %p228 = por %p226, %p227
    %s230 = sadd.s32 %s229, 1
    %p233 = scmp.eq.s32.totalorder %s17, 1
    %p234 = scmp.ne.s32.totalorder %s229, %s231
    %p235 = scmp.eq.s32.totalorder %s17, 0
    %p236 = por %p234, %p235
    %p237 = scmp.ne.s32.totalorder %s229, %s231
    %p238 = scmp.eq.s32.totalorder %s22, 1
    %p239 = por %p237, %p238
    %p240 = scmp.ne.s32.totalorder %s231, %s232
    %p241 = scmp.eq.s32.totalorder %s22, 0
    %p242 = por %p240, %p241
    %p243 = scmp.ne.s32.totalorder %s231, %s232
    %p244 = scmp.eq.s32.totalorder %s23, 1
    %p245 = por %p243, %p244
    %p247 = scmp.ne.s32.totalorder %s232, %s246
    %p248 = scmp.eq.s32.totalorder %s23, 0
    %p249 = por %p247, %p248
    %s251 = sadd.s32 %s250, 1
    %p254 = scmp.eq.s32.totalorder %s17, 1
    %p255 = scmp.ne.s32.totalorder %s250, %s252
    %p256 = scmp.eq.s32.totalorder %s17, 0
    %p257 = por %p255, %p256
    %p258 = scmp.ne.s32.totalorder %s250, %s252
    %p259 = scmp.eq.s32.totalorder %s22, 1
    %p260 = por %p258, %p259
    %p261 = scmp.ne.s32.totalorder %s252, %s253
    %p262 = scmp.eq.s32.totalorder %s22, 0
    %p263 = por %p261, %p262
    %p264 = scmp.ne.s32.totalorder %s252, %s253
    %p265 = scmp.eq.s32.totalorder %s23, 1
    %p266 = por %p264, %p265
    %p268 = scmp.ne.s32.totalorder %s253, %s267
    %p269 = scmp.eq.s32.totalorder %s23, 0
    %p270 = por %p268, %p269
    %s271 = ssub.s32 %s17, %s24
    %p272 = scmp.eq.s32.totalorder %s271, 0
    %s274 = sadd.s32 %s273, 1
    %s275 = scalar_select %p272, %s273, %s274
    %p278 = pneg %p272
    %p279 = scmp.eq.s32.totalorder %s17, 1
    %p280 = por %p278, %p279
    %p281 = scmp.ne.s32.totalorder %s273, %s276
    %p282 = scmp.eq.s32.totalorder %s17, 0
    %p283 = por %p281, %p282
    %p284 = scmp.ne.s32.totalorder %s273, %s276
    %p285 = scmp.eq.s32.totalorder %s22, 1
    %p286 = por %p284, %p285
    %p287 = scmp.ne.s32.totalorder %s276, %s277
    %p288 = scmp.eq.s32.totalorder %s22, 0
    %p289 = por %p287, %p288
    %p290 = scmp.ne.s32.totalorder %s276, %s277
    %p291 = scmp.eq.s32.totalorder %s23, 1
    %p292 = por %p290, %p291
    %p294 = scmp.ne.s32.totalorder %s277, %s293
    %p295 = scmp.eq.s32.totalorder %s23, 0
    %p296 = por %p294, %p295
    %p297 = scmp.le.s32.totalorder 1, %s17
    %p298 = scmp.lt.s32.totalorder %s17, 3
    %p299 = pnand %p297, %p298
    %p300 = pneg %p299
    // Predicated region
    $region9: #{upsamp_forward.1} parent=5 // pred_check
      _
    $region10: #{upsamp_forward.1} parent=5 // pred_check_branch
      %302 = sbr.rel (%p299) target = $region12
    $region11: #{upsamp_forward.1} parent=5 // pred_region
      %s303 = ssub.s32 %s17, 1
      // Predicated region
      $region13: #{upsamp_forward.1} parent=11 // pred_check
        %p304 = pneg %p116
      $region14: #{upsamp_forward.1} parent=11 // pred_check_branch
        %306 = sbr.rel (%p304) target = $region16
      $region15: #{upsamp_forward.1} parent=11 // pred_region
        _
      $region16: #{upsamp_forward.1} parent=11 // pred_fallthru
        _
      // Predicated region
      $region17: #{upsamp_forward.1} parent=11 // pred_check
        %p307 = pneg %p137
      $region18: #{upsamp_forward.1} parent=11 // pred_check_branch
        %309 = sbr.rel (%p307) target = $region20
      $region19: #{upsamp_forward.1} parent=11 // pred_region
        _
      $region20: #{upsamp_forward.1} parent=11 // pred_fallthru
        _
      // Predicated region
      $region21: #{upsamp_forward.1} parent=11 // pred_check
        %p310 = pneg %p158
      $region22: #{upsamp_forward.1} parent=11 // pred_check_branch
        %312 = sbr.rel (%p310) target = $region24
      $region23: #{upsamp_forward.1} parent=11 // pred_region
        _
      $region24: #{upsamp_forward.1} parent=11 // pred_fallthru
        _
      // Predicated region
      $region25: #{upsamp_forward.1} parent=11 // pred_check
        %p313 = pneg %p179
      $region26: #{upsamp_forward.1} parent=11 // pred_check_branch
        %315 = sbr.rel (%p313) target = $region28
      $region27: #{upsamp_forward.1} parent=11 // pred_region
        _
      $region28: #{upsamp_forward.1} parent=11 // pred_fallthru
        _
      // Predicated region
      $region29: #{upsamp_forward.1} parent=11 // pred_check
        %p316 = pneg %p200
      $region30: #{upsamp_forward.1} parent=11 // pred_check_branch
        %318 = sbr.rel (%p316) target = $region32
      $region31: #{upsamp_forward.1} parent=11 // pred_region
        _
      $region32: #{upsamp_forward.1} parent=11 // pred_fallthru
        _
      // Predicated region
      $region33: #{upsamp_forward.1} parent=11 // pred_check
        %p319 = pneg %p221
      $region34: #{upsamp_forward.1} parent=11 // pred_check_branch
        %321 = sbr.rel (%p319) target = $region36
      $region35: #{upsamp_forward.1} parent=11 // pred_region
        _
      $region36: #{upsamp_forward.1} parent=11 // pred_fallthru
        _
      // Predicated region
      $region37: #{upsamp_forward.1} parent=11 // pred_check
        %p322 = pneg %p242
      $region38: #{upsamp_forward.1} parent=11 // pred_check_branch
        %324 = sbr.rel (%p322) target = $region40
      $region39: #{upsamp_forward.1} parent=11 // pred_region
        _
      $region40: #{upsamp_forward.1} parent=11 // pred_fallthru
        _
      // Predicated region
      $region41: #{upsamp_forward.1} parent=11 // pred_check
        %p325 = pneg %p263
      $region42: #{upsamp_forward.1} parent=11 // pred_check_branch
        %327 = sbr.rel (%p325) target = $region44
      $region43: #{upsamp_forward.1} parent=11 // pred_region
        _
      $region44: #{upsamp_forward.1} parent=11 // pred_fallthru
        _
    $region12: #{upsamp_forward.1} parent=5 // pred_fallthru
      _
    %p328 = scmp.lt.s32.totalorder %s17, 2
    // Predicated region
    $region45: #{upsamp_forward.1} parent=5 // pred_check
      %p329 = pneg %p328
    $region46: #{upsamp_forward.1} parent=5 // pred_check_branch
      %331 = sbr.rel (%p329) target = $region48
    $region47: #{upsamp_forward.1} parent=5 // pred_region
      // Predicated region
      $region49: #{upsamp_forward.1} parent=47 // pred_check
        %p332 = pneg %p37
      $region50: #{upsamp_forward.1} parent=47 // pred_check_branch
        %334 = sbr.rel (%p332) target = $region52
      $region51: #{upsamp_forward.1} parent=47 // pred_region
        %p335 = scmp.lt.s32.totalorder %s17, 1
        %s336 = scalar_select %p335, %s17, 1
        %s337 = smul.addr %s336, 2
        %s338 = smul.addr %s337, 4
        %s339 = scalar_lea.vmem %s0, %s338
      $region52: #{upsamp_forward.1} parent=47 // pred_fallthru
        _
      // Predicated region
      $region53: #{upsamp_forward.1} parent=47 // pred_check
        %p340 = pneg %p63
      $region54: #{upsamp_forward.1} parent=47 // pred_check_branch
        %342 = sbr.rel (%p340) target = $region56
      $region55: #{upsamp_forward.1} parent=47 // pred_region
        %p343 = scmp.lt.s32.totalorder %s17, 1
        %s344 = scalar_select %p343, %s17, 1
        %s345 = smul.addr %s344, 2
        %s346 = smul.addr %s345, 4
        %s347 = scalar_lea.vmem %s1, %s346
      $region56: #{upsamp_forward.1} parent=47 // pred_fallthru
        _
      // Predicated region
      $region57: #{upsamp_forward.1} parent=47 // pred_check
        %p348 = pneg %p89
      $region58: #{upsamp_forward.1} parent=47 // pred_check_branch
        %350 = sbr.rel (%p348) target = $region60
      $region59: #{upsamp_forward.1} parent=47 // pred_region
        %p351 = scmp.lt.s32.totalorder %s17, 1
        %s352 = scalar_select %p351, %s17, 1
        %s353 = smul.addr %s352, 4
        %s354 = scalar_lea.vmem %s2, %s353
      $region60: #{upsamp_forward.1} parent=47 // pred_fallthru
        _
    $region48: #{upsamp_forward.1} parent=5 // pred_fallthru
      _
    %p355 = scmp.le.s32.totalorder 1, %s17
    %p356 = scmp.lt.s32.totalorder %s17, 3
    %p357 = pnand %p355, %p356
    %p358 = pneg %p357
    // Predicated region
    $region61: #{upsamp_forward.1} parent=5 // pred_check
      _
    $region62: #{upsamp_forward.1} parent=5 // pred_check_branch
      %360 = sbr.rel (%p357) target = $region64
    $region63: #{upsamp_forward.1} parent=5 // pred_region
      %s361 = ssub.s32 %s17, 1
      %p362 = scmp.lt.s32.totalorder %s22, 1
      %s363 = scalar_select %p362, %s22, 1
      %s364 = smul.addr %s363, 2
      %s365 = smul.addr %s364, 4
      %s366 = scalar_lea.vmem %s0, %s365
      %p367 = pneg %p43
      %p368 = pneg %p40
      %p369 = scmp.lt.s32.totalorder %s22, 1
      %s370 = scalar_select %p369, %s22, 1
      %s371 = smul.addr %s370, 2
      %s372 = smul.addr %s371, 4
      %s373 = scalar_lea.vmem %s1, %s372
      %p374 = pneg %p69
      %p375 = pneg %p66
      %p376 = scmp.lt.s32.totalorder %s22, 1
      %s377 = scalar_select %p376, %s22, 1
      %s378 = smul.addr %s377, 4
      %s379 = scalar_lea.vmem %s2, %s378
      %p380 = pneg %p95
      %p381 = pneg %p92
      %p382 = pneg %p116
      %p383 = pneg %p113
      %p384 = pneg %p137
      %p385 = pneg %p134
      %p386 = pneg %p158
      %p387 = pneg %p155
      %p388 = pneg %p179
      %p389 = pneg %p176
      %p390 = pneg %p200
      %p391 = pneg %p197
      %p392 = pneg %p221
      %p393 = pneg %p218
      %p394 = pneg %p242
      %p395 = pneg %p239
      %p396 = pneg %p263
      %p397 = pneg %p260
      %p398 = pneg %p289
      %p399 = pneg %p286
      %p400 = scmp.lt.s32.totalorder %s22, 1
      %s401 = scalar_select %p400, %s22, 1
      %s402 = smul.addr %s401, 2
      %s403 = smul.addr %s402, 8
      %s404 = scalar_lea.vmem %s11, %s403
      %p405 = scmp.lt.s32.totalorder %s22, 1
      %s406 = scalar_select %p405, %s22, 1
      %s407 = smul.addr %s406, 2
      %s408 = smul.addr %s407, 4
      %s409 = scalar_lea.vmem %s0, %s408
      %p410 = scmp.lt.s32.totalorder %s22, 1
      %s411 = scalar_select %p410, %s22, 1
      %s412 = smul.addr %s411, 2
      %s413 = smul.addr %s412, 4
      %s414 = scalar_lea.vmem %s1, %s413
      %p415 = scmp.lt.s32.totalorder %s22, 1
      %s416 = scalar_select %p415, %s22, 1
      %s417 = smul.addr %s416, 4
      %s418 = scalar_lea.vmem %s2, %s417
      %p419 = scmp.lt.s32.totalorder %s22, 1
      %s420 = scalar_select %p419, %s22, 1
      %s421 = smul.addr %s420, 2
      %s422 = smul.addr %s421, 8
      %s423 = scalar_lea.vmem %s11, %s422
      %v425 = vld [vmem:[%s4] sm:$0x1]
      %v426 = vld [vmem:[%s6] sm:$0x1]
      %v427 = vld [vmem:[%s7] sm:$0x1]
      %v428 = vld [vmem:[%s9] sm:$0x1]
      %v429 = vld [vmem:[%s10] sm:$0x1]
      %v430 = vld [vmem:[%s409] sm:$0xf]
      %v431 = vld [vmem:[%s409 + $0x4] sm:$0x1]
      %v432 = vld [vmem:[%s414] sm:$0xf]
      %v433 = vld [vmem:[%s414 + $0x4] sm:$0x1]
      %v434 = vld [vmem:[%s418] sm:$0xf]
      %v435 = vld [vmem:[%s3] sm:$0xf]
      %v436 = vld [vmem:[%s3 + $0x4] sm:$0xf]
      %v437 = vld [vmem:[%s3 + $0x8] sm:$0xf]
      %v438 = vld [vmem:[%s3 + $0xc] sm:$0xf]
      %v439 = vld [vmem:[%s3 + $0x10] sm:$0xf]
      %v440 = vld [vmem:[%s3 + $0x14] sm:$0xf]
      %v441 = vld [vmem:[%s3 + $0x18] sm:$0xf]
      %v442 = vld [vmem:[%s3 + $0x1c] sm:$0xf]
      %v444 = vperm.slane %v425, 0
      %v454 = vunpack.c.l.b16 %v435
      %v455 = vunpack.c.l.b16 %v436
      %v456 = vunpack.c.l.b16 %v437
      %v457 = vunpack.c.l.b16 %v438
      %v458 = vunpack.c.l.b16 %v439
      %v459 = vunpack.c.l.b16 %v440
      %v460 = vunpack.c.l.b16 %v441
      %v461 = vunpack.c.l.b16 %v442
      %v462 = vpack.c.b16 %v455, %v454
      %v463 = vpack.c.b16 %v457, %v456
      %v464 = vpack.c.b16 %v459, %v458
      %v465 = vpack.c.b16 %v461, %v460
      %vm470 = vcmask 523264
      %v472 = vsel %vm470, %v434, 0
      %474 = vmatpush.bf16.msra.mxu0 0
      %475 = vmatpush.bf16.msra.mxu0 0
      %476 = vmatpush.bf16.msra.mxu0 0
      %477 = vmatpush.bf16.msra.mxu0 0
      %478 = vmatpush.bf16.msra.mxu0 %v465
      %479 = vmatpush.bf16.msra.mxu0 %v464
      %480 = vmatpush.bf16.msra.mxu0 %v463
      %481 = vmatpush.bf16.msra.mxu0 %v462
      %482 = vmatmul.bf16.gmra.mxu0 %v472
      %v483 = vpop.f32.mrf.mxu0
      %v484 = vadd.f32 %v444, %v483
      %v485 = vpop.f32.mrf.mxu0
      %486 = vdwg.mxu0
      %v487 = vpack.c.bf16 %v484, %v484
      %vm488 = vcmask 1043456
      %v491 = vsel %vm488, %v487, 0
      %v494 = vunpack.c.l.b16 %v432
      %v495 = vunpack.c.l.b16 %v433
      %v496 = vpack.c.b16 %v495, %v494
      %498 = vrot.lane.b32.xlu0 %v491, 72
      %v499 = vpop.permute.xlu0 %498
      %vm500 = vcmask 588800
      %v503 = vsel %vm500, %v496, %v499
      %s505 = scalar_lea.vmem %s3, 32
      %v506 = vld [vmem:[%s505] sm:$0xf]
      %v507 = vld [vmem:[%s505 + $0x4] sm:$0xf]
      %v508 = vld [vmem:[%s505 + $0x8] sm:$0xf]
      %v509 = vld [vmem:[%s505 + $0xc] sm:$0xf]
      %v510 = vld [vmem:[%s505 + $0x10] sm:$0xf]
      %v511 = vld [vmem:[%s505 + $0x14] sm:$0xf]
      %v512 = vld [vmem:[%s505 + $0x18] sm:$0xf]
      %v513 = vld [vmem:[%s505 + $0x1c] sm:$0xf]
      %v522 = vunpack.c.l.b16 %v506
      %v523 = vunpack.c.l.b16 %v507
      %v524 = vunpack.c.l.b16 %v508
      %v525 = vunpack.c.l.b16 %v509
      %v526 = vunpack.c.l.b16 %v510
      %v527 = vunpack.c.l.b16 %v511
      %v528 = vunpack.c.l.b16 %v512
      %v529 = vunpack.c.l.b16 %v513
      %v530 = vpack.c.b16 %v523, %v522
      %v531 = vpack.c.b16 %v525, %v524
      %v532 = vpack.c.b16 %v527, %v526
      %v533 = vpack.c.b16 %v529, %v528
      %538 = vmatpush.bf16.msra.mxu0 0
      %539 = vmatpush.bf16.msra.mxu0 0
      %540 = vmatpush.bf16.msra.mxu0 0
      %541 = vmatpush.bf16.msra.mxu0 0
      %542 = vmatpush.bf16.msra.mxu0 %v533
      %543 = vmatpush.bf16.msra.mxu0 %v532
      %544 = vmatpush.bf16.msra.mxu0 %v531
      %545 = vmatpush.bf16.msra.mxu0 %v530
      %546 = vmatmul.bf16.gmra.mxu0 %v472
      %v547 = vpop.f32.mrf.mxu0
      %v548 = vadd.f32 %v444, %v547
      %v549 = vpop.f32.mrf.mxu0
      %550 = vdwg.mxu0
      %v551 = vpack.c.bf16 %v548, %v548
      %v553 = vunpack.c.l.b16 %v551
      %v554 = vpack.c.b16 %v553, %v553
      %v556 = vshrl.u32 %v554, 16
      %v558 = vrot.slane %v556, 7
      %v559 = vshll.u32 %v554, 16
      %v561 = vor.u32 %v558, %v559
      %vm563 = vcmask 1040384
      %vm564 = vsmask.f32 256
      %vm565 = vmand %vm563, %vm564
      %v566 = vsel %vm565, 0, %v561
      %v569 = vunpack.c.l.b16 %v430
      %v570 = vunpack.c.l.b16 %v431
      %v571 = vpack.c.b16 %v570, %v569
      %573 = vrot.lane.b32.xlu0 %v566, 72
      %v574 = vpop.permute.xlu0 %573
      %v577 = vsel %vm500, %v571, %v574
      %v579 = vld [vmem:[%s5] sm:$0xf]
      %v580 = vld [vmem:[%s5 + $0x4] sm:$0xf]
      %v581 = vld [vmem:[%s5 + $0x8] sm:$0xf]
      %v582 = vld [vmem:[%s5 + $0xc] sm:$0xf]
      %v583 = vld [vmem:[%s5 + $0x10] sm:$0xf]
      %v584 = vld [vmem:[%s5 + $0x14] sm:$0xf]
      %v585 = vld [vmem:[%s5 + $0x18] sm:$0xf]
      %v586 = vld [vmem:[%s5 + $0x1c] sm:$0xf]
      %v587 = vld [vmem:[%s5 + $0x20] sm:$0xf]
      %v588 = vld [vmem:[%s5 + $0x24] sm:$0xf]
      %v589 = vld [vmem:[%s5 + $0x28] sm:$0xf]
      %v590 = vld [vmem:[%s5 + $0x2c] sm:$0xf]
      %v591 = vld [vmem:[%s5 + $0x30] sm:$0xf]
      %v592 = vld [vmem:[%s5 + $0x34] sm:$0xf]
      %v593 = vld [vmem:[%s5 + $0x38] sm:$0xf]
      %v594 = vld [vmem:[%s5 + $0x3c] sm:$0xf]
      %v595 = vld [vmem:[%s5 + $0x40] sm:$0xf]
      %v596 = vld [vmem:[%s5 + $0x44] sm:$0xf]
      %s597 = scalar_lea.vmem %s5, 72
      %v598 = vld [vmem:[%s597] sm:$0xf]
      %v599 = vld [vmem:[%s597 + $0x4] sm:$0xf]
      %v600 = vld [vmem:[%s597 + $0x8] sm:$0xf]
      %v601 = vld [vmem:[%s597 + $0xc] sm:$0xf]
      %v602 = vld [vmem:[%s597 + $0x10] sm:$0xf]
      %v603 = vld [vmem:[%s597 + $0x14] sm:$0xf]
      %v604 = vld [vmem:[%s597 + $0x18] sm:$0xf]
      %v605 = vld [vmem:[%s597 + $0x1c] sm:$0xf]
      %v606 = vld [vmem:[%s597 + $0x20] sm:$0xf]
      %v607 = vld [vmem:[%s597 + $0x24] sm:$0xf]
      %v608 = vld [vmem:[%s597 + $0x28] sm:$0xf]
      %v609 = vld [vmem:[%s597 + $0x2c] sm:$0xf]
      %v610 = vld [vmem:[%s597 + $0x30] sm:$0xf]
      %v611 = vld [vmem:[%s597 + $0x34] sm:$0xf]
      %v612 = vld [vmem:[%s597 + $0x38] sm:$0xf]
      %v613 = vld [vmem:[%s597 + $0x3c] sm:$0xf]
      %v614 = vld [vmem:[%s597 + $0x40] sm:$0xf]
      %v615 = vld [vmem:[%s597 + $0x44] sm:$0xf]
      %v634 = vunpack.c.l.b16 %v598
      %v635 = vunpack.c.l.b16 %v599
      %v636 = vunpack.c.l.b16 %v600
      %v637 = vunpack.c.l.b16 %v601
      %v638 = vunpack.c.l.b16 %v602
      %v639 = vunpack.c.l.b16 %v603
      %v640 = vunpack.c.l.b16 %v604
      %v641 = vunpack.c.l.b16 %v605
      %v642 = vunpack.c.l.b16 %v606
      %v643 = vunpack.c.l.b16 %v607
      %v644 = vunpack.c.l.b16 %v608
      %v645 = vunpack.c.l.b16 %v609
      %v646 = vunpack.c.l.b16 %v610
      %v647 = vunpack.c.l.b16 %v611
      %v648 = vunpack.c.l.b16 %v612
      %v649 = vunpack.c.l.b16 %v613
      %v650 = vunpack.c.l.b16 %v614
      %v651 = vunpack.c.l.b16 %v615
      %v652 = vpack.c.b16 %v635, %v634
      %v653 = vpack.c.b16 %v637, %v636
      %v654 = vpack.c.b16 %v639, %v638
      %v655 = vpack.c.b16 %v641, %v640
      %v656 = vpack.c.b16 %v643, %v642
      %v657 = vpack.c.b16 %v645, %v644
      %v658 = vpack.c.b16 %v647, %v646
      %v659 = vpack.c.b16 %v649, %v648
      %v660 = vpack.c.b16 %v651, %v650
      %vm670 = vcmask 130048
      %v671 = vsel %vm670, %v499, 0
      %673 = vmatpush.bf16.msra.mxu0 %v659
      %674 = vmatpush.bf16.msra.mxu0 %v658
      %675 = vmatpush.bf16.msra.mxu0 %v657
      %676 = vmatpush.bf16.msra.mxu0 %v656
      %677 = vmatpush.bf16.msra.mxu0 %v655
      %678 = vmatpush.bf16.msra.mxu0 %v654
      %679 = vmatpush.bf16.msra.mxu0 %v653
      %680 = vmatpush.bf16.msra.mxu0 %v652
      %681 = vmatmul.bf16.gmra.mxu0 %v503
      %v682 = vpop.f32.mrf.mxu0
      %v683 = vadd.f32 0.0, %v682
      %v684 = vpop.f32.mrf.mxu0
      %685 = vdwg.mxu0
      %686 = vmatpush.bf16.msra.mxu0 0
      %687 = vmatpush.bf16.msra.mxu0 0
      %688 = vmatpush.bf16.msra.mxu0 0
      %689 = vmatpush.bf16.msra.mxu0 0
      %690 = vmatpush.bf16.msra.mxu0 0
      %691 = vmatpush.bf16.msra.mxu0 0
      %692 = vmatpush.bf16.msra.mxu0 0
      %693 = vmatpush.bf16.msra.mxu0 %v660
      %694 = vmatmul.bf16.gmra.mxu0 %v671
      %v695 = vpop.f32.mrf.mxu0
      %v696 = vadd.f32 %v683, %v695
      %v697 = vpop.f32.mrf.mxu0
      %698 = vdwg.mxu0
      %v717 = vunpack.c.l.b16 %v579
      %v718 = vunpack.c.l.b16 %v580
      %v719 = vunpack.c.l.b16 %v581
      %v720 = vunpack.c.l.b16 %v582
      %v721 = vunpack.c.l.b16 %v583
      %v722 = vunpack.c.l.b16 %v584
      %v723 = vunpack.c.l.b16 %v585
      %v724 = vunpack.c.l.b16 %v586
      %v725 = vunpack.c.l.b16 %v587
      %v726 = vunpack.c.l.b16 %v588
      %v727 = vunpack.c.l.b16 %v589
      %v728 = vunpack.c.l.b16 %v590
      %v729 = vunpack.c.l.b16 %v591
      %v730 = vunpack.c.l.b16 %v592
      %v731 = vunpack.c.l.b16 %v593
      %v732 = vunpack.c.l.b16 %v594
      %v733 = vunpack.c.l.b16 %v595
      %v734 = vunpack.c.l.b16 %v596
      %v735 = vpack.c.b16 %v718, %v717
      %v736 = vpack.c.b16 %v720, %v719
      %v737 = vpack.c.b16 %v722, %v721
      %v738 = vpack.c.b16 %v724, %v723
      %v739 = vpack.c.b16 %v726, %v725
      %v740 = vpack.c.b16 %v728, %v727
      %v741 = vpack.c.b16 %v730, %v729
      %v742 = vpack.c.b16 %v732, %v731
      %v743 = vpack.c.b16 %v734, %v733
      %v753 = vsel %vm670, %v574, 0
      %755 = vmatpush.bf16.msra.mxu0 %v742
      %756 = vmatpush.bf16.msra.mxu0 %v741
      %757 = vmatpush.bf16.msra.mxu0 %v740
      %758 = vmatpush.bf16.msra.mxu0 %v739
      %759 = vmatpush.bf16.msra.mxu0 %v738
      %760 = vmatpush.bf16.msra.mxu0 %v737
      %761 = vmatpush.bf16.msra.mxu0 %v736
      %762 = vmatpush.bf16.msra.mxu0 %v735
      %763 = vmatmul.bf16.gmra.mxu0 %v577
      %v764 = vpop.f32.mrf.mxu0
      %v765 = vadd.f32 %v696, %v764
      %v766 = vpop.f32.mrf.mxu0
      %767 = vdwg.mxu0
      %768 = vmatpush.bf16.msra.mxu0 0
      %769 = vmatpush.bf16.msra.mxu0 0
      %770 = vmatpush.bf16.msra.mxu0 0
      %771 = vmatpush.bf16.msra.mxu0 0
      %772 = vmatpush.bf16.msra.mxu0 0
      %773 = vmatpush.bf16.msra.mxu0 0
      %774 = vmatpush.bf16.msra.mxu0 0
      %775 = vmatpush.bf16.msra.mxu0 %v743
      %776 = vmatmul.bf16.gmra.mxu0 %v753
      %v777 = vpop.f32.mrf.mxu0
      %v778 = vadd.f32 %v765, %v777
      %v779 = vpop.f32.mrf.mxu0
      %780 = vdwg.mxu0
      %s781 = scalar_lea.vmem %s5, 144
      %v782 = vld [vmem:[%s781] sm:$0xf]
      %v783 = vld [vmem:[%s781 + $0x4] sm:$0xf]
      %v784 = vld [vmem:[%s781 + $0x8] sm:$0xf]
      %v785 = vld [vmem:[%s781 + $0xc] sm:$0xf]
      %v786 = vld [vmem:[%s781 + $0x10] sm:$0xf]
      %v787 = vld [vmem:[%s781 + $0x14] sm:$0xf]
      %v788 = vld [vmem:[%s781 + $0x18] sm:$0xf]
      %v789 = vld [vmem:[%s781 + $0x1c] sm:$0xf]
      %v790 = vld [vmem:[%s781 + $0x20] sm:$0xf]
      %v791 = vld [vmem:[%s781 + $0x24] sm:$0xf]
      %v792 = vld [vmem:[%s781 + $0x28] sm:$0xf]
      %v793 = vld [vmem:[%s781 + $0x2c] sm:$0xf]
      %v794 = vld [vmem:[%s781 + $0x30] sm:$0xf]
      %v795 = vld [vmem:[%s781 + $0x34] sm:$0xf]
      %v796 = vld [vmem:[%s781 + $0x38] sm:$0xf]
      %v797 = vld [vmem:[%s781 + $0x3c] sm:$0xf]
      %v798 = vld [vmem:[%s781 + $0x40] sm:$0xf]
      %v799 = vld [vmem:[%s781 + $0x44] sm:$0xf]
      %v800 = vshrl.u32 %v577, 16
      %v802 = vshll.u32 %v577, 16
      %v804 = vrot.slane %v802, 1
      %v805 = vor.u32 %v800, %v804
      %v806 = vshrl.u32 %v574, 16
      %v808 = vshll.u32 %v574, 16
      %v810 = vrot.slane %v808, 1
      %v811 = vor.u32 %v806, %v810
      %v831 = vunpack.c.l.b16 %v782
      %v832 = vunpack.c.l.b16 %v783
      %v833 = vunpack.c.l.b16 %v784
      %v834 = vunpack.c.l.b16 %v785
      %v835 = vunpack.c.l.b16 %v786
      %v836 = vunpack.c.l.b16 %v787
      %v837 = vunpack.c.l.b16 %v788
      %v838 = vunpack.c.l.b16 %v789
      %v839 = vunpack.c.l.b16 %v790
      %v840 = vunpack.c.l.b16 %v791
      %v841 = vunpack.c.l.b16 %v792
      %v842 = vunpack.c.l.b16 %v793
      %v843 = vunpack.c.l.b16 %v794
      %v844 = vunpack.c.l.b16 %v795
      %v845 = vunpack.c.l.b16 %v796
      %v846 = vunpack.c.l.b16 %v797
      %v847 = vunpack.c.l.b16 %v798
      %v848 = vunpack.c.l.b16 %v799
      %v849 = vpack.c.b16 %v832, %v831
      %v850 = vpack.c.b16 %v834, %v833
      %v851 = vpack.c.b16 %v836, %v835
      %v852 = vpack.c.b16 %v838, %v837
      %v853 = vpack.c.b16 %v840, %v839
      %v854 = vpack.c.b16 %v842, %v841
      %v855 = vpack.c.b16 %v844, %v843
      %v856 = vpack.c.b16 %v846, %v845
      %v857 = vpack.c.b16 %v848, %v847
      %v868 = vsel %vm670, %v811, 0
      %870 = vmatpush.bf16.msra.mxu0 %v856
      %871 = vmatpush.bf16.msra.mxu0 %v855
      %872 = vmatpush.bf16.msra.mxu0 %v854
      %873 = vmatpush.bf16.msra.mxu0 %v853
      %874 = vmatpush.bf16.msra.mxu0 %v852
      %875 = vmatpush.bf16.msra.mxu0 %v851
      %876 = vmatpush.bf16.msra.mxu0 %v850
      %877 = vmatpush.bf16.msra.mxu0 %v849
      %878 = vmatmul.bf16.gmra.mxu0 %v805
      %v879 = vpop.f32.mrf.mxu0
      %v880 = vadd.f32 0.0, %v879
      %v881 = vpop.f32.mrf.mxu0
      %882 = vdwg.mxu0
      %883 = vmatpush.bf16.msra.mxu0 0
      %884 = vmatpush.bf16.msra.mxu0 0
      %885 = vmatpush.bf16.msra.mxu0 0
      %886 = vmatpush.bf16.msra.mxu0 0
      %887 = vmatpush.bf16.msra.mxu0 0
      %888 = vmatpush.bf16.msra.mxu0 0
      %889 = vmatpush.bf16.msra.mxu0 0
      %890 = vmatpush.bf16.msra.mxu0 %v857
      %891 = vmatmul.bf16.gmra.mxu0 %v868
      %v892 = vpop.f32.mrf.mxu0
      %v893 = vadd.f32 %v880, %v892
      %v894 = vpop.f32.mrf.mxu0
      %895 = vdwg.mxu0
      %v896 = vadd.f32 %v778, %v893
      %v898 = vperm.slane %v426, 0
      %v900 = vmul.f32 %v896, %v898
      %v902 = vperm.slane %v427, 0
      %v904 = vadd.f32 %v900, %v902
      %v905 = vmax.f32 %v904, 0.0
      %v906 = vpack.c.bf16 %v905, %v905
      %907 = vmatpush.bf16.msra.mxu0 %v659
      %908 = vmatpush.bf16.msra.mxu0 %v658
      %909 = vmatpush.bf16.msra.mxu0 %v657
      %910 = vmatpush.bf16.msra.mxu0 %v656
      %911 = vmatpush.bf16.msra.mxu0 %v655
      %912 = vmatpush.bf16.msra.mxu0 %v654
      %913 = vmatpush.bf16.msra.mxu0 %v653
      %914 = vmatpush.bf16.msra.mxu0 %v652
      %915 = vmatmul.bf16.gmra.mxu0 %v805
      %v916 = vpop.f32.mrf.mxu0
      %v917 = vadd.f32 0.0, %v916
      %v918 = vpop.f32.mrf.mxu0
      %919 = vdwg.mxu0
      %920 = vmatpush.bf16.msra.mxu0 0
      %921 = vmatpush.bf16.msra.mxu0 0
      %922 = vmatpush.bf16.msra.mxu0 0
      %923 = vmatpush.bf16.msra.mxu0 0
      %924 = vmatpush.bf16.msra.mxu0 0
      %925 = vmatpush.bf16.msra.mxu0 0
      %926 = vmatpush.bf16.msra.mxu0 0
      %927 = vmatpush.bf16.msra.mxu0 %v660
      %928 = vmatmul.bf16.gmra.mxu0 %v868
      %v929 = vpop.f32.mrf.mxu0
      %v930 = vadd.f32 %v917, %v929
      %v931 = vpop.f32.mrf.mxu0
      %932 = vdwg.mxu0
      %933 = vmatpush.bf16.msra.mxu0 %v742
      %934 = vmatpush.bf16.msra.mxu0 %v741
      %935 = vmatpush.bf16.msra.mxu0 %v740
      %936 = vmatpush.bf16.msra.mxu0 %v739
      %937 = vmatpush.bf16.msra.mxu0 %v738
      %938 = vmatpush.bf16.msra.mxu0 %v737
      %939 = vmatpush.bf16.msra.mxu0 %v736
      %940 = vmatpush.bf16.msra.mxu0 %v735
      %941 = vmatmul.bf16.gmra.mxu0 %v503
      %v942 = vpop.f32.mrf.mxu0
      %v943 = vadd.f32 %v930, %v942
      %v944 = vpop.f32.mrf.mxu0
      %945 = vdwg.mxu0
      %946 = vmatpush.bf16.msra.mxu0 0
      %947 = vmatpush.bf16.msra.mxu0 0
      %948 = vmatpush.bf16.msra.mxu0 0
      %949 = vmatpush.bf16.msra.mxu0 0
      %950 = vmatpush.bf16.msra.mxu0 0
      %951 = vmatpush.bf16.msra.mxu0 0
      %952 = vmatpush.bf16.msra.mxu0 0
      %953 = vmatpush.bf16.msra.mxu0 %v743
      %954 = vmatmul.bf16.gmra.mxu0 %v671
      %v955 = vpop.f32.mrf.mxu0
      %v956 = vadd.f32 %v943, %v955
      %v957 = vpop.f32.mrf.mxu0
      %958 = vdwg.mxu0
      %v959 = vshrl.u32 %v503, 16
      %v961 = vshll.u32 %v503, 16
      %v963 = vrot.slane %v961, 1
      %v964 = vor.u32 %v959, %v963
      %v965 = vshrl.u32 %v499, 16
      %v967 = vshll.u32 %v499, 16
      %v969 = vrot.slane %v967, 1
      %v970 = vor.u32 %v965, %v969
      %v973 = vsel %vm670, %v970, 0
      %975 = vmatpush.bf16.msra.mxu0 %v856
      %976 = vmatpush.bf16.msra.mxu0 %v855
      %977 = vmatpush.bf16.msra.mxu0 %v854
      %978 = vmatpush.bf16.msra.mxu0 %v853
      %979 = vmatpush.bf16.msra.mxu0 %v852
      %980 = vmatpush.bf16.msra.mxu0 %v851
      %981 = vmatpush.bf16.msra.mxu0 %v850
      %982 = vmatpush.bf16.msra.mxu0 %v849
      %983 = vmatmul.bf16.gmra.mxu0 %v964
      %v984 = vpop.f32.mrf.mxu0
      %v985 = vadd.f32 0.0, %v984
      %v986 = vpop.f32.mrf.mxu0
      %987 = vdwg.mxu0
      %988 = vmatpush.bf16.msra.mxu0 0
      %989 = vmatpush.bf16.msra.mxu0 0
      %990 = vmatpush.bf16.msra.mxu0 0
      %991 = vmatpush.bf16.msra.mxu0 0
      %992 = vmatpush.bf16.msra.mxu0 0
      %993 = vmatpush.bf16.msra.mxu0 0
      %994 = vmatpush.bf16.msra.mxu0 0
      %995 = vmatpush.bf16.msra.mxu0 %v857
      %996 = vmatmul.bf16.gmra.mxu0 %v973
      %v997 = vpop.f32.mrf.mxu0
      %v998 = vadd.f32 %v985, %v997
      %v999 = vpop.f32.mrf.mxu0
      %1000 = vdwg.mxu0
      %v1001 = vadd.f32 %v956, %v998
      %v1002 = vmul.f32 %v1001, %v898
      %v1003 = vadd.f32 %v1002, %v902
      %v1004 = vmax.f32 %v1003, 0.0
      %v1005 = vpack.c.bf16 %v1004, %v1004
      %v1006 = vld [vmem:[%s8] sm:$0xf]
      %v1007 = vld [vmem:[%s8 + $0x4] sm:$0xf]
      %v1008 = vld [vmem:[%s8 + $0x8] sm:$0xf]
      %v1009 = vld [vmem:[%s8 + $0xc] sm:$0xf]
      %v1010 = vld [vmem:[%s8 + $0x10] sm:$0xf]
      %v1011 = vld [vmem:[%s8 + $0x14] sm:$0xf]
      %v1012 = vld [vmem:[%s8 + $0x18] sm:$0xf]
      %v1013 = vld [vmem:[%s8 + $0x1c] sm:$0xf]
      %s1014 = scalar_lea.vmem %s8, 32
      %v1015 = vld [vmem:[%s1014] sm:$0xf]
      %v1016 = vld [vmem:[%s1014 + $0x4] sm:$0xf]
      %v1017 = vld [vmem:[%s1014 + $0x8] sm:$0xf]
      %v1018 = vld [vmem:[%s1014 + $0xc] sm:$0xf]
      %v1019 = vld [vmem:[%s1014 + $0x10] sm:$0xf]
      %v1020 = vld [vmem:[%s1014 + $0x14] sm:$0xf]
      %v1021 = vld [vmem:[%s1014 + $0x18] sm:$0xf]
      %v1022 = vld [vmem:[%s1014 + $0x1c] sm:$0xf]
      %v1031 = vunpack.c.l.b16 %v1015
      %v1032 = vunpack.c.l.b16 %v1016
      %v1033 = vunpack.c.l.b16 %v1017
      %v1034 = vunpack.c.l.b16 %v1018
      %v1035 = vunpack.c.l.b16 %v1019
      %v1036 = vunpack.c.l.b16 %v1020
      %v1037 = vunpack.c.l.b16 %v1021
      %v1038 = vunpack.c.l.b16 %v1022
      %v1039 = vpack.c.b16 %v1032, %v1031
      %v1040 = vpack.c.b16 %v1034, %v1033
      %v1041 = vpack.c.b16 %v1036, %v1035
      %v1042 = vpack.c.b16 %v1038, %v1037
      %v1048 = vsel %vm470, %v1005, 0
      %1050 = vmatpush.bf16.msra.mxu0 0
      %1051 = vmatpush.bf16.msra.mxu0 0
      %1052 = vmatpush.bf16.msra.mxu0 0
      %1053 = vmatpush.bf16.msra.mxu0 0
      %1054 = vmatpush.bf16.msra.mxu0 %v1042
      %1055 = vmatpush.bf16.msra.mxu0 %v1041
      %1056 = vmatpush.bf16.msra.mxu0 %v1040
      %1057 = vmatpush.bf16.msra.mxu0 %v1039
      %1058 = vmatmul.bf16.gmra.mxu0 %v1048
      %v1059 = vpop.f32.mrf.mxu0
      %v1060 = vadd.f32 0.0, %v1059
      %v1061 = vpop.f32.mrf.mxu0
      %1062 = vdwg.mxu0
      %v1071 = vunpack.c.l.b16 %v1006
      %v1072 = vunpack.c.l.b16 %v1007
      %v1073 = vunpack.c.l.b16 %v1008
      %v1074 = vunpack.c.l.b16 %v1009
      %v1075 = vunpack.c.l.b16 %v1010
      %v1076 = vunpack.c.l.b16 %v1011
      %v1077 = vunpack.c.l.b16 %v1012
      %v1078 = vunpack.c.l.b16 %v1013
      %v1079 = vpack.c.b16 %v1072, %v1071
      %v1080 = vpack.c.b16 %v1074, %v1073
      %v1081 = vpack.c.b16 %v1076, %v1075
      %v1082 = vpack.c.b16 %v1078, %v1077
      %v1088 = vsel %vm470, %v906, 0
      %1090 = vmatpush.bf16.msra.mxu0 0
      %1091 = vmatpush.bf16.msra.mxu0 0
      %1092 = vmatpush.bf16.msra.mxu0 0
      %1093 = vmatpush.bf16.msra.mxu0 0
      %1094 = vmatpush.bf16.msra.mxu0 %v1082
      %1095 = vmatpush.bf16.msra.mxu0 %v1081
      %1096 = vmatpush.bf16.msra.mxu0 %v1080
      %1097 = vmatpush.bf16.msra.mxu0 %v1079
      %1098 = vmatmul.bf16.gmra.mxu0 %v1088
      %v1099 = vpop.f32.mrf.mxu0
      %v1100 = vadd.f32 %v1060, %v1099
      %v1101 = vpop.f32.mrf.mxu0
      %1102 = vdwg.mxu0
      %s1103 = scalar_lea.vmem %s8, 64
      %v1104 = vld [vmem:[%s1103] sm:$0xf]
      %v1105 = vld [vmem:[%s1103 + $0x4] sm:$0xf]
      %v1106 = vld [vmem:[%s1103 + $0x8] sm:$0xf]
      %v1107 = vld [vmem:[%s1103 + $0xc] sm:$0xf]
      %v1108 = vld [vmem:[%s1103 + $0x10] sm:$0xf]
      %v1109 = vld [vmem:[%s1103 + $0x14] sm:$0xf]
      %v1110 = vld [vmem:[%s1103 + $0x18] sm:$0xf]
      %v1111 = vld [vmem:[%s1103 + $0x1c] sm:$0xf]
      %v1113 = vunpack.c.l.b16 %v906
      %v1114 = vpack.c.b16 %v1113, %v1113
      %v1116 = vshrl.u32 %v1114, 16
      %v1118 = vshll.u32 %v1114, 16
      %v1120 = vrot.slane %v1118, 1
      %v1121 = vor.u32 %v1116, %v1120
      %v1130 = vunpack.c.l.b16 %v1104
      %v1131 = vunpack.c.l.b16 %v1105
      %v1132 = vunpack.c.l.b16 %v1106
      %v1133 = vunpack.c.l.b16 %v1107
      %v1134 = vunpack.c.l.b16 %v1108
      %v1135 = vunpack.c.l.b16 %v1109
      %v1136 = vunpack.c.l.b16 %v1110
      %v1137 = vunpack.c.l.b16 %v1111
      %v1138 = vpack.c.b16 %v1131, %v1130
      %v1139 = vpack.c.b16 %v1133, %v1132
      %v1140 = vpack.c.b16 %v1135, %v1134
      %v1141 = vpack.c.b16 %v1137, %v1136
      %v1147 = vsel %vm470, %v1121, 0
      %1149 = vmatpush.bf16.msra.mxu0 0
      %1150 = vmatpush.bf16.msra.mxu0 0
      %1151 = vmatpush.bf16.msra.mxu0 0
      %1152 = vmatpush.bf16.msra.mxu0 0
      %1153 = vmatpush.bf16.msra.mxu0 %v1141
      %1154 = vmatpush.bf16.msra.mxu0 %v1140
      %1155 = vmatpush.bf16.msra.mxu0 %v1139
      %1156 = vmatpush.bf16.msra.mxu0 %v1138
      %1157 = vmatmul.bf16.gmra.mxu0 %v1147
      %v1158 = vpop.f32.mrf.mxu0
      %v1159 = vadd.f32 0.0, %v1158
      %v1160 = vpop.f32.mrf.mxu0
      %1161 = vdwg.mxu0
      %v1162 = vadd.f32 %v1100, %v1159
      %v1164 = vperm.slane %v428, 0
      %v1166 = vmul.f32 %v1162, %v1164
      %v1168 = vperm.slane %v429, 0
      %v1170 = vadd.f32 %v1166, %v1168
      %v1171 = vmax.f32 %v1170, 0.0
      %1172 = vst [vmem:[%s423] sm:$0x7f] %v1171
      %v1173 = vld [vmem:[%s8] sm:$0xf]
      %v1174 = vld [vmem:[%s8 + $0x4] sm:$0xf]
      %v1175 = vld [vmem:[%s8 + $0x8] sm:$0xf]
      %v1176 = vld [vmem:[%s8 + $0xc] sm:$0xf]
      %v1177 = vld [vmem:[%s8 + $0x10] sm:$0xf]
      %v1178 = vld [vmem:[%s8 + $0x14] sm:$0xf]
      %v1179 = vld [vmem:[%s8 + $0x18] sm:$0xf]
      %v1180 = vld [vmem:[%s8 + $0x1c] sm:$0xf]
      %v1181 = vld [vmem:[%s1014] sm:$0xf]
      %v1182 = vld [vmem:[%s1014 + $0x4] sm:$0xf]
      %v1183 = vld [vmem:[%s1014 + $0x8] sm:$0xf]
      %v1184 = vld [vmem:[%s1014 + $0xc] sm:$0xf]
      %v1185 = vld [vmem:[%s1014 + $0x10] sm:$0xf]
      %v1186 = vld [vmem:[%s1014 + $0x14] sm:$0xf]
      %v1187 = vld [vmem:[%s1014 + $0x18] sm:$0xf]
      %v1188 = vld [vmem:[%s1014 + $0x1c] sm:$0xf]
      %v1197 = vunpack.c.l.b16 %v1181
      %v1198 = vunpack.c.l.b16 %v1182
      %v1199 = vunpack.c.l.b16 %v1183
      %v1200 = vunpack.c.l.b16 %v1184
      %v1201 = vunpack.c.l.b16 %v1185
      %v1202 = vunpack.c.l.b16 %v1186
      %v1203 = vunpack.c.l.b16 %v1187
      %v1204 = vunpack.c.l.b16 %v1188
      %v1205 = vpack.c.b16 %v1198, %v1197
      %v1206 = vpack.c.b16 %v1200, %v1199
      %v1207 = vpack.c.b16 %v1202, %v1201
      %v1208 = vpack.c.b16 %v1204, %v1203
      %1213 = vmatpush.bf16.msra.mxu0 0
      %1214 = vmatpush.bf16.msra.mxu0 0
      %1215 = vmatpush.bf16.msra.mxu0 0
      %1216 = vmatpush.bf16.msra.mxu0 0
      %1217 = vmatpush.bf16.msra.mxu0 %v1208
      %1218 = vmatpush.bf16.msra.mxu0 %v1207
      %1219 = vmatpush.bf16.msra.mxu0 %v1206
      %1220 = vmatpush.bf16.msra.mxu0 %v1205
      %1221 = vmatmul.bf16.gmra.mxu0 %v1147
      %v1222 = vpop.f32.mrf.mxu0
      %v1223 = vadd.f32 0.0, %v1222
      %v1224 = vpop.f32.mrf.mxu0
      %1225 = vdwg.mxu0
      %v1234 = vunpack.c.l.b16 %v1173
      %v1235 = vunpack.c.l.b16 %v1174
      %v1236 = vunpack.c.l.b16 %v1175
      %v1237 = vunpack.c.l.b16 %v1176
      %v1238 = vunpack.c.l.b16 %v1177
      %v1239 = vunpack.c.l.b16 %v1178
      %v1240 = vunpack.c.l.b16 %v1179
      %v1241 = vunpack.c.l.b16 %v1180
      %v1242 = vpack.c.b16 %v1235, %v1234
      %v1243 = vpack.c.b16 %v1237, %v1236
      %v1244 = vpack.c.b16 %v1239, %v1238
      %v1245 = vpack.c.b16 %v1241, %v1240
      %1250 = vmatpush.bf16.msra.mxu0 0
      %1251 = vmatpush.bf16.msra.mxu0 0
      %1252 = vmatpush.bf16.msra.mxu0 0
      %1253 = vmatpush.bf16.msra.mxu0 0
      %1254 = vmatpush.bf16.msra.mxu0 %v1245
      %1255 = vmatpush.bf16.msra.mxu0 %v1244
      %1256 = vmatpush.bf16.msra.mxu0 %v1243
      %1257 = vmatpush.bf16.msra.mxu0 %v1242
      %1258 = vmatmul.bf16.gmra.mxu0 %v1048
      %v1259 = vpop.f32.mrf.mxu0
      %v1260 = vadd.f32 %v1223, %v1259
      %v1261 = vpop.f32.mrf.mxu0
      %1262 = vdwg.mxu0
      %v1263 = vld [vmem:[%s1103] sm:$0xf]
      %v1264 = vld [vmem:[%s1103 + $0x4] sm:$0xf]
      %v1265 = vld [vmem:[%s1103 + $0x8] sm:$0xf]
      %v1266 = vld [vmem:[%s1103 + $0xc] sm:$0xf]
      %v1267 = vld [vmem:[%s1103 + $0x10] sm:$0xf]
      %v1268 = vld [vmem:[%s1103 + $0x14] sm:$0xf]
      %v1269 = vld [vmem:[%s1103 + $0x18] sm:$0xf]
      %v1270 = vld [vmem:[%s1103 + $0x1c] sm:$0xf]
      %v1272 = vunpack.c.l.b16 %v1005
      %v1273 = vpack.c.b16 %v1272, %v1272
      %v1275 = vshrl.u32 %v1273, 16
      %v1277 = vshll.u32 %v1273, 16
      %v1279 = vrot.slane %v1277, 1
      %v1280 = vor.u32 %v1275, %v1279
      %v1289 = vunpack.c.l.b16 %v1263
      %v1290 = vunpack.c.l.b16 %v1264
      %v1291 = vunpack.c.l.b16 %v1265
      %v1292 = vunpack.c.l.b16 %v1266
      %v1293 = vunpack.c.l.b16 %v1267
      %v1294 = vunpack.c.l.b16 %v1268
      %v1295 = vunpack.c.l.b16 %v1269
      %v1296 = vunpack.c.l.b16 %v1270
      %v1297 = vpack.c.b16 %v1290, %v1289
      %v1298 = vpack.c.b16 %v1292, %v1291
      %v1299 = vpack.c.b16 %v1294, %v1293
      %v1300 = vpack.c.b16 %v1296, %v1295
      %v1306 = vsel %vm470, %v1280, 0
      %1308 = vmatpush.bf16.msra.mxu0 0
      %1309 = vmatpush.bf16.msra.mxu0 0
      %1310 = vmatpush.bf16.msra.mxu0 0
      %1311 = vmatpush.bf16.msra.mxu0 0
      %1312 = vmatpush.bf16.msra.mxu0 %v1300
      %1313 = vmatpush.bf16.msra.mxu0 %v1299
      %1314 = vmatpush.bf16.msra.mxu0 %v1298
      %1315 = vmatpush.bf16.msra.mxu0 %v1297
      %1316 = vmatmul.bf16.gmra.mxu0 %v1306
      %v1317 = vpop.f32.mrf.mxu0
      %v1318 = vadd.f32 0.0, %v1317
      %v1319 = vpop.f32.mrf.mxu0
      %1320 = vdwg.mxu0
      %v1321 = vadd.f32 %v1260, %v1318
      %v1322 = vmul.f32 %v1321, %v1164
      %v1323 = vadd.f32 %v1322, %v1168
      %v1324 = vmax.f32 %v1323, 0.0
      %s1325 = scalar_lea.vmem %s423, 8
      %1326 = vst [vmem:[%s1325] sm:$0x7f] %v1324
      %p1327 = scmp.lt.s32.totalorder %s22, 1
      %s1328 = scalar_select %p1327, %s22, 1
      %s1329 = smul.addr %s1328, 2
      %s1330 = smul.addr %s1329, 8
      %s1331 = scalar_lea.vmem %s11, %s1330
      // Predicated region
      $region65: #{upsamp_forward.1} parent=63 // pred_check
        %p1332 = pneg %p286
      $region66: #{upsamp_forward.1} parent=63 // pred_check_branch
        %1334 = sbr.rel (%p1332) target = $region68
      $region67: #{upsamp_forward.1} parent=63 // pred_region
        _
      $region68: #{upsamp_forward.1} parent=63 // pred_fallthru
        _
    $region64: #{upsamp_forward.1} parent=5 // pred_fallthru
      _
    %p1335 = scmp.le.s32.totalorder 2, %s17
    // Predicated region
    $region69: #{upsamp_forward.1} parent=5 // pred_check
      %p1336 = pneg %p1335
    $region70: #{upsamp_forward.1} parent=5 // pred_check_branch
      %1338 = sbr.rel (%p1336) target = $region72
    $region71: #{upsamp_forward.1} parent=5 // pred_region
      %s1339 = ssub.s32 %s17, 2
      // Predicated region
      $region73: #{upsamp_forward.1} parent=71 // pred_check
        %p1340 = pneg %p292
      $region74: #{upsamp_forward.1} parent=71 // pred_check_branch
        %1342 = sbr.rel (%p1340) target = $region76
      $region75: #{upsamp_forward.1} parent=71 // pred_region
        %p1343 = scmp.lt.s32.totalorder %s23, 1
        %s1344 = scalar_select %p1343, %s23, 1
        %s1345 = smul.addr %s1344, 2
        %s1346 = smul.addr %s1345, 8
        %s1347 = scalar_lea.vmem %s11, %s1346
      $region76: #{upsamp_forward.1} parent=71 // pred_fallthru
        _
    $region72: #{upsamp_forward.1} parent=5 // pred_fallthru
      _
  $region6: #{upsamp_forward.1} parent=0 // loop_footer
    %s21 = sadd.s32 1, %s17
  $region7: #{upsamp_forward.1} parent=0 // loop_footer_branch
    %16 = sbr.rel target = $region3
  $region8: #{upsamp_forward.1} parent=0 // loop_exit
    _

</llo_original>
